<compile_context>
chip_gen: v6e
topology: v6e:2x2x1
jax: 0.10.0
libtpu: 0.0.40
codegen_flags: <defaults>
</compile_context>

<pallas_src>
import functools

import jax
import jax.numpy as jnp
from jax.experimental import pallas as pl
from jax.experimental.pallas import tpu as pltpu


def _round_up(x, m):
    return (x + m - 1) // m * m


def _vmem_budget_bytes():
    """~80% of the physical VMEM of the current TPU generation.

    v7x only has 64 MiB per TensorCore, so a fixed 100 MiB cap would exceed the
    chip; query the hardware and leave headroom.
    """
    try:
        cap = int(pltpu.get_tpu_info().vmem_capacity_bytes)
    except Exception:
        cap = 64 << 20                      # conservative (v7x-sized) fallback
    return int(cap * 0.8)


# ---------------------------------------------------------------------------
# Kernel 1: fused GRU cell (single invocation, whole arrays in VMEM).
# Two wide matmuls, (B,E)@(E,3H) and (B,H)@(H,3H), instead of six tiny ones.
# ---------------------------------------------------------------------------
def _gru_cell_kernel(emb_ref, h0_ref, wi3_ref, wh3_ref, bi3_ref, bh3_ref, hout_ref):
    H = h0_ref.shape[1]
    emb = emb_ref[...]                                   # (B, E)
    h = h0_ref[...]                                      # (B, H)
    gi = jnp.dot(emb, wi3_ref[...], preferred_element_type=jnp.float32) + bi3_ref[...]
    gh = jnp.dot(h, wh3_ref[...], preferred_element_type=jnp.float32) + bh3_ref[...]
    r = jax.nn.sigmoid(gi[:, 0:H] + gh[:, 0:H])          # PyTorch gate order r|z|n
    z = jax.nn.sigmoid(gi[:, H:2 * H] + gh[:, H:2 * H])
    n = jnp.tanh(gi[:, 2 * H:3 * H] + r * gh[:, 2 * H:3 * H])
    hout_ref[...] = (1.0 - z) * n + z * h                # h' = (1-z)*n + z*h


# ---------------------------------------------------------------------------
# Kernel 2: vocab-tiled fc1 + online log-softmax statistics.
# Grid = (nc, nvc): nc-way "parallel" split of the vocab tiles (uses both v7x
# TensorCores) x nvc "arbitrary" vocab tiles per split.
# ---------------------------------------------------------------------------
def _fc1_logsoftmax_kernel(h_ref, wfc_ref, bfc_ref, logits_ref, lse_ref, m_scr, l_scr):
    """Per (c, j): logits tile = h @ Wfc[:, tile] + bfc[tile] is streamed
    straight to its (Bp, tile_v) slot of the (Bp, Vp) output, so the writeback
    DMA overlaps the next weight tile's MXU work.  Per-split running max /
    sum-exp live in VMEM scratch; the last j of each split emits
    lse_c = m + log(l).  The wrapper merges the per-split lse's (logaddexp) and
    subtracts them from the raw logits.
    """
    j = pl.program_id(1)

    @pl.when(j == 0)
    def _init_stats():
        m_scr[...] = jnp.full(m_scr.shape, -jnp.inf, dtype=m_scr.dtype)
        l_scr[...] = jnp.zeros(l_scr.shape, dtype=l_scr.dtype)

    logits = (jnp.dot(h_ref[...], wfc_ref[...], preferred_element_type=jnp.float32)
              + bfc_ref[...])                            # (Bp, tile_v) f32
    logits_ref[...] = logits                             # streamed out per tile

    # Online max / sum-exp (XLU + EUP slots; hidden under the weight-tile DMA).
    m_prev = m_scr[...]
    m_new = jnp.maximum(m_prev, jnp.max(logits, axis=1, keepdims=True))
    l_scr[...] = (l_scr[...] * jnp.exp(m_prev - m_new)
                  + jnp.sum(jnp.exp(logits - m_new), axis=1, keepdims=True))
    m_scr[...] = m_new

    @pl.when(j == pl.num_programs(1) - 1)
    def _emit_lse():
        lse_ref[...] = (m_scr[...] + jnp.log(l_scr[...]))[None, :, :]


@functools.partial(jax.jit, static_argnames=("tile_v",))
def rnn_decoder_forward(x_ids, decoder_hidden, params, tile_v=1024):
    """RNNDecoder.forward for kind='gru', attn=False, num_layers=1 (eval-mode dropout).

    x_ids:          (B,)       int32 token ids (PyTorch x before unsqueeze(1))
    decoder_hidden: (1, B, H)  f32
    returns (log_probs (B, V), hidden (1, B, H), attn_scores=None, context_vec=None)
    """
    B = x_ids.shape[0]
    H = decoder_hidden.shape[-1]
    E = params["embedding"].shape[1]
    V = params["fc1_w"].shape[1]

    # ---- static tiling / padding decisions ----------------------------------
    tile_v = max(128, (int(tile_v) // 128) * 128)        # lane-dense vocab tiles
    tile_v = min(tile_v, _round_up(V, 128))
    nv = -(-V // tile_v)                                 # vocab tiles needed
    nc = 2 if nv >= 2 else 1                             # 2-way parallel split (v7x 2 TCs)
    nvc = -(-nv // nc)                                   # tiles per split
    nv = nc * nvc
    Vp = nv * tile_v
    Bp = _round_up(max(B, 8), 8)                         # sublane-aligned batch
    budget = _vmem_budget_bytes()

    # ---- small glue ops (fused by jit around the kernels) --------------------
    # TODO(synk): the embedding row gather could be folded into the GRU kernel
    # via PrefetchScalarGridSpec(num_scalar_prefetch=1) + a pl.Element gather
    # BlockSpec; it only moves O(B*E) bytes per step, so it stays an XLA gather.
    emb = jnp.take(params["embedding"], x_ids, axis=0)   # (B, E)
    h0 = decoder_hidden[0]                               # (B, H)
    if Bp != B:
        emb = jnp.pad(emb, ((0, Bp - B), (0, 0)))
        h0 = jnp.pad(h0, ((0, Bp - B), (0, 0)))

    wfc = params["fc1_w"]                                # (H, V), f32 or bf16
    bfc = params["fc1_b"]                                # (1, V) f32
    if Vp != V:
        # Vocab-tail masking: bias -1e30 => padded logits never win the running
        # max and exp(pad - m) underflows to 0, so the lse stays exact (f32).
        # (For a production decode loop, pre-pad the weights once at init.)
        wfc = jnp.pad(wfc, ((0, 0), (0, Vp - V)))
        bfc = jnp.pad(bfc, ((0, 0), (0, Vp - V)), constant_values=-1e30)

    # ---- kernel 1: GRU cell ---------------------------------------------------
    gru_vmem = int(((E + H) * 3 * H + 6 * H) * 4 + Bp * (E + 2 * H) * 4 + (4 << 20))
    gru_cost = pl.CostEstimate(
        flops=2 * Bp * (E + H) * 3 * H,
        transcendentals=3 * Bp * H,
        bytes_accessed=((E + H) * 3 * H + 6 * H) * 4 + Bp * (E + 2 * H) * 4)
    h_new = pl.pallas_call(
        _gru_cell_kernel,
        out_shape=jax.ShapeDtypeStruct((Bp, H), jnp.float32),
        compiler_params=pltpu.CompilerParams(
            vmem_limit_bytes=int(min(max(gru_vmem, 32 << 20), budget))),
        cost_estimate=gru_cost,
    )(emb, h0, params["w_i3"], params["w_h3"], params["b_i3"], params["b_h3"])

    # Hoisted ONCE (not once per vocab tile): cast h to the fc1 weight dtype.
    h_fc = h_new.astype(wfc.dtype)

    # ---- kernel 2: vocab-tiled fc1 + online log-softmax -----------------------
    wsize = wfc.dtype.itemsize
    fc_vmem = int(2 * H * tile_v * wsize                 # double-buffered fc1_w tiles
                  + 2 * 8 * tile_v * 4                   # double-buffered fc1_b tiles
                  + 2 * Bp * H * wsize                   # resident h block
                  + 2 * Bp * tile_v * 4                  # streamed logits out tile
                  + 2 * nc * Bp * 4 + 2 * Bp * 256 * 4   # lse out + m/l scratches
                  + (4 << 20))                           # margin
    fc_cost = pl.CostEstimate(
        flops=2 * Bp * H * Vp,
        transcendentals=Bp * Vp + Bp * nv,
        bytes_accessed=(H * Vp * wsize + Vp * 4 + Bp * H * wsize
                        + Bp * Vp * 4 + nc * Bp * 4))

    grid_spec = pltpu.PrefetchScalarGridSpec(
        num_scalar_prefetch=0,
        grid=(nc, nvc),
        in_specs=[
            pl.BlockSpec((Bp, H), lambda c, j: (0, 0)),                 # h (resident)
            # fc1 weight / bias tiles: double-buffered by default; add
            # pipeline_mode=pl.Buffered(3) here if a DMA gap is still visible.
            pl.BlockSpec((H, tile_v), lambda c, j: (0, c * nvc + j)),   # fc1_w tile
            pl.BlockSpec((1, tile_v), lambda c, j: (0, c * nvc + j)),   # fc1_b tile
        ],
        out_specs=(
            pl.BlockSpec((Bp, tile_v), lambda c, j: (0, c * nvc + j)),  # logits (streamed)
            pl.BlockSpec((1, Bp, 1), lambda c, j: (c, 0, 0)),           # per-split lse
        ),
        scratch_shapes=[
            pltpu.VMEM((Bp, 1), jnp.float32),            # running max m
            pltpu.VMEM((Bp, 1), jnp.float32),            # running sum-exp l
        ],
    )

    logits_raw, lse_parts = pl.pallas_call(
        _fc1_logsoftmax_kernel,
        out_shape=(jax.ShapeDtypeStruct((Bp, Vp), jnp.float32),
                   jax.ShapeDtypeStruct((nc, Bp, 1), jnp.float32)),
        grid_spec=grid_spec,
        compiler_params=pltpu.CompilerParams(
            dimension_semantics=("parallel", "arbitrary"),
            vmem_limit_bytes=int(min(max(fc_vmem, 32 << 20), budget))),
        cost_estimate=fc_cost,
    )(h_fc, wfc, bfc)

    # Merge per-split lse's and subtract; fuses with the padding-strip slice.
    lse = lse_parts[0]
    for c in range(1, nc):
        lse = jnp.logaddexp(lse, lse_parts[c])
    log_probs = (logits_raw - lse)[:B, :V]

    hidden = h_new[:B][None, :, :]                       # (num_layers=1, B, H)
    # attn=False -> attn_scores and context_vec are None (matches reference).
    return log_probs, hidden, None, None


def init_params(key, vocab_size, embed_size, hidden_size, fc_weight_dtype=jnp.float32):
    """Deterministic synthetic parameters, laid out for the kernels.

    fc_weight_dtype=jnp.bfloat16 halves HBM traffic of the dominant fc1 weight
    stream (accumulation stays f32 in the kernel); default f32 matches PyTorch.
    TODO(synk): int8 weights + per-column scales (v5e/v6e) / fp8 (v7x) would cut
    the weight stream further but are not implemented here.
    """
    ks = jax.random.split(key, 7)
    scale = 0.1
    H = hidden_size

    embedding = scale * jax.random.normal(ks[0], (vocab_size, embed_size), jnp.float32)
    embedding = embedding.at[0].set(0.0)                 # padding_idx=0

    # nn.GRU: weight_ih_l0 (3H, E), weight_hh_l0 (3H, H), biases (3H,), order r|z|n.
    w_ih = scale * jax.random.normal(ks[1], (3 * H, embed_size), jnp.float32)
    w_hh = scale * jax.random.normal(ks[2], (3 * H, H), jnp.float32)
    b_ih = scale * jax.random.normal(ks[3], (3 * H,), jnp.float32)
    b_hh = scale * jax.random.normal(ks[4], (3 * H,), jnp.float32)

    # fc1: Linear(H, V)
    fc1_w = scale * jax.random.normal(ks[5], (vocab_size, H), jnp.float32)
    fc1_b = scale * jax.random.normal(ks[6], (vocab_size,), jnp.float32)

    return {
        "embedding": embedding,
        # fused + pre-transposed GRU weights: columns grouped [W_ir^T | W_iz^T | W_in^T]
        "w_i3": w_ih.T,                                  # (E, 3H)
        "w_h3": w_hh.T,                                  # (H, 3H)
        "b_i3": b_ih[None, :],                           # (1, 3H)
        "b_h3": b_hh[None, :],                           # (1, 3H)
        "fc1_w": fc1_w.T.astype(fc_weight_dtype),        # (H, V)
        "fc1_b": fc1_b[None, :],                         # (1, V)
    }


def _reference_forward(x_ids, decoder_hidden, params):
    """Pure-JAX reference of the PyTorch forward (eval-mode dropout)."""
    emb = jnp.take(params["embedding"], x_ids, axis=0)
    h = decoder_hidden[0]
    H = h.shape[1]
    gi = emb @ params["w_i3"] + params["b_i3"]
    gh = h @ params["w_h3"] + params["b_h3"]
    r = jax.nn.sigmoid(gi[:, :H] + gh[:, :H])
    z = jax.nn.sigmoid(gi[:, H:2 * H] + gh[:, H:2 * H])
    n = jnp.tanh(gi[:, 2 * H:] + r * gh[:, 2 * H:])
    h_new = (1.0 - z) * n + z * h
    logits = h_new @ params["fc1_w"].astype(jnp.float32) + params["fc1_b"]
    return jax.nn.log_softmax(logits, axis=1), h_new[None, :, :]


if __name__ == "__main__":
    # Small, lane-friendly shapes. V is deliberately NOT a multiple of 128 to
    # exercise the vocab-tail masking of the tiled log-softmax.
    B, E, H, V = 8, 128, 256, 500

    key = jax.random.PRNGKey(0)
    k_param, k_x, k_h = jax.random.split(key, 3)

    params = init_params(k_param, vocab_size=V, embed_size=E, hidden_size=H)
    x_ids = jax.random.randint(k_x, (B,), 0, V, dtype=jnp.int32)
    decoder_hidden = 0.1 * jax.random.normal(k_h, (1, B, H), jnp.float32)

    # TODO(synk): dropout is treated as identity (eval mode); training-mode
    # stochastic dropout would need pltpu.prng_* inside the kernels.
    ref_lp, ref_h = _reference_forward(x_ids, decoder_hidden, params)

    # Multi-tile path: exercises streamed-out logits, the cross-tile online
    # softmax, the 2-way "parallel" split, and the vocab-tail masking.
    # (tile_v=256 only because V=500 is tiny; production default is 1024.)
    lp1, h1, a1, c1 = rnn_decoder_forward(x_ids, decoder_hidden, params, tile_v=256)
    # Production-default path (tile_v=1024 is clamped to the small vocab here).
    lp2, h2, a2, c2 = rnn_decoder_forward(x_ids, decoder_hidden, params)
    jax.block_until_ready((lp1, h1, lp2, h2))

    for lp, h, a, c in ((lp1, h1, a1, c1), (lp2, h2, a2, c2)):
        assert lp.shape == (B, V) and h.shape == (1, B, H)
        assert a is None and c is None
        # Sanity 1: log_softmax rows exponentiate-sum to 1 (catches any
        # vocab-padding leakage into the lse).
        row_sums = jnp.exp(lp).sum(axis=1)
        assert bool(jnp.all(jnp.abs(row_sums - 1.0) < 1e-4)), "rows do not sum to 1"
        # Sanity 2: match the pure-JAX reference.
        assert bool(jnp.max(jnp.abs(h - ref_h)) < 1e-3), "hidden mismatch"
        assert bool(jnp.max(jnp.abs(lp - ref_lp)) < 1e-2), "log_probs mismatch"

    # Optional bf16 fc1 weights (halves the dominant HBM weight stream).
    params_bf16 = dict(params, fc1_w=params["fc1_w"].astype(jnp.bfloat16))
    lp3, h3, _, _ = rnn_decoder_forward(x_ids, decoder_hidden, params_bf16, tile_v=256)
    jax.block_until_ready((lp3, h3))
    assert bool(jnp.all(jnp.abs(jnp.exp(lp3).sum(axis=1) - 1.0) < 1e-3))
    assert bool(jnp.max(jnp.abs(lp3 - ref_lp)) < 1e-1), "bf16 log_probs mismatch"

    print("KERNEL_OK")
</pallas_src>

<mosaic_0001>
module attributes {stable_mosaic.version = 11 : i64} {
  func.func @_gru_cell_kernel(%arg0: memref<8x128xf32, #tpu.memory_space<vmem>>, %arg1: memref<8x256xf32, #tpu.memory_space<vmem>>, %arg2: memref<128x768xf32, #tpu.memory_space<vmem>>, %arg3: memref<256x768xf32, #tpu.memory_space<vmem>>, %arg4: memref<1x768xf32, #tpu.memory_space<vmem>>, %arg5: memref<1x768xf32, #tpu.memory_space<vmem>>, %arg6: memref<8x256xf32, #tpu.memory_space<vmem>>) attributes {dimension_semantics = [], scalar_prefetch = 0 : i64, scratch_operands = 0 : i64, tpu.core_type = #tpu.core_type<tc>} {
    %c0 = arith.constant 0 : index
    %c0_0 = arith.constant 0 : index
    %0 = vector.load %arg0[%c0, %c0_0] : memref<8x128xf32, #tpu.memory_space<vmem>>, vector<8x128xf32>
    %c0_1 = arith.constant 0 : index
    %c0_2 = arith.constant 0 : index
    %1 = vector.load %arg1[%c0_1, %c0_2] : memref<8x256xf32, #tpu.memory_space<vmem>>, vector<8x256xf32>
    %c0_3 = arith.constant 0 : index
    %c0_4 = arith.constant 0 : index
    %2 = vector.load %arg2[%c0_3, %c0_4] : memref<128x768xf32, #tpu.memory_space<vmem>>, vector<128x768xf32>
    %cst = arith.constant dense<0.000000e+00> : vector<8x768xf32>
    %3 = tpu.matmul %0, %2, %cst {dimension_numbers = #tpu.dot_dimension_numbers<[1], [0], [0], [1], [0, 0, 1, 1], [], []>} : vector<8x128xf32>, vector<128x768xf32>, vector<8x768xf32> -> vector<8x768xf32>
    %c0_5 = arith.constant 0 : index
    %c0_6 = arith.constant 0 : index
    %4 = vector.load %arg4[%c0_5, %c0_6] : memref<1x768xf32, #tpu.memory_space<vmem>>, vector<1x768xf32>
    %5 = vector.broadcast %4 : vector<1x768xf32> to vector<8x768xf32>
    %6 = arith.addf %3, %5 : vector<8x768xf32>
    %c0_7 = arith.constant 0 : index
    %c0_8 = arith.constant 0 : index
    %7 = vector.load %arg3[%c0_7, %c0_8] : memref<256x768xf32, #tpu.memory_space<vmem>>, vector<256x768xf32>
    %cst_9 = arith.constant dense<0.000000e+00> : vector<8x768xf32>
    %8 = tpu.matmul %1, %7, %cst_9 {dimension_numbers = #tpu.dot_dimension_numbers<[1], [0], [0], [1], [0, 0, 1, 1], [], []>} : vector<8x256xf32>, vector<256x768xf32>, vector<8x768xf32> -> vector<8x768xf32>
    %c0_10 = arith.constant 0 : index
    %c0_11 = arith.constant 0 : index
    %9 = vector.load %arg5[%c0_10, %c0_11] : memref<1x768xf32, #tpu.memory_space<vmem>>, vector<1x768xf32>
    %10 = vector.broadcast %9 : vector<1x768xf32> to vector<8x768xf32>
    %11 = arith.addf %8, %10 : vector<8x768xf32>
    %12 = vector.extract_strided_slice %6 {offsets = [0, 0], sizes = [8, 256], strides = [1, 1]} : vector<8x768xf32> to vector<8x256xf32>
    %13 = vector.extract_strided_slice %11 {offsets = [0, 0], sizes = [8, 256], strides = [1, 1]} : vector<8x768xf32> to vector<8x256xf32>
    %14 = arith.addf %12, %13 : vector<8x256xf32>
    %15 = arith.negf %14 : vector<8x256xf32>
    %16 = math.exp %15 : vector<8x256xf32>
    %cst_12 = arith.constant 1.000000e+00 : f32
    %17 = vector.broadcast %cst_12 : f32 to vector<8x256xf32>
    %18 = arith.addf %17, %16 : vector<8x256xf32>
    %19 = arith.divf %17, %18 : vector<8x256xf32>
    %20 = vector.extract_strided_slice %6 {offsets = [0, 256], sizes = [8, 256], strides = [1, 1]} : vector<8x768xf32> to vector<8x256xf32>
    %21 = vector.extract_strided_slice %11 {offsets = [0, 256], sizes = [8, 256], strides = [1, 1]} : vector<8x768xf32> to vector<8x256xf32>
    %22 = arith.addf %20, %21 : vector<8x256xf32>
    %23 = arith.negf %22 : vector<8x256xf32>
    %24 = math.exp %23 : vector<8x256xf32>
    %cst_13 = arith.constant 1.000000e+00 : f32
    %25 = vector.broadcast %cst_13 : f32 to vector<8x256xf32>
    %26 = arith.addf %25, %24 : vector<8x256xf32>
    %27 = arith.divf %25, %26 : vector<8x256xf32>
    %28 = vector.extract_strided_slice %6 {offsets = [0, 512], sizes = [8, 256], strides = [1, 1]} : vector<8x768xf32> to vector<8x256xf32>
    %29 = vector.extract_strided_slice %11 {offsets = [0, 512], sizes = [8, 256], strides = [1, 1]} : vector<8x768xf32> to vector<8x256xf32>
    %30 = arith.mulf %19, %29 : vector<8x256xf32>
    %31 = arith.addf %28, %30 : vector<8x256xf32>
    %32 = math.tanh %31 : vector<8x256xf32>
    %cst_14 = arith.constant 1.000000e+00 : f32
    %33 = vector.broadcast %cst_14 : f32 to vector<8x256xf32>
    %34 = arith.subf %33, %27 : vector<8x256xf32>
    %35 = arith.mulf %34, %32 : vector<8x256xf32>
    %36 = arith.mulf %27, %1 : vector<8x256xf32>
    %37 = arith.addf %35, %36 : vector<8x256xf32>
    %c0_15 = arith.constant 0 : index
    %c0_16 = arith.constant 0 : index
    %38 = vector.load %arg6[%c0_15, %c0_16] : memref<8x256xf32, #tpu.memory_space<vmem>>, vector<8x256xf32>
    tpu.vector_store %arg6[%c0_15, %c0_16], %37 {strides = array<i32>} : memref<8x256xf32, #tpu.memory_space<vmem>>, vector<8x256xf32>,
    return
  }
}

module attributes {stable_mosaic.version = 11 : i64} {
  func.func @_fc1_logsoftmax_kernel(%arg0: i32, %arg1: i32, %arg2: memref<8x256xf32, #tpu.memory_space<vmem>>, %arg3: memref<256x256xf32, #tpu.memory_space<vmem>>, %arg4: memref<1x256xf32, #tpu.memory_space<vmem>>, %arg5: memref<8x256xf32, #tpu.memory_space<vmem>>, %arg6: memref<1x8x1xf32, #tpu.memory_space<vmem>>, %arg7: memref<8x1xf32, #tpu.memory_space<vmem>>, %arg8: memref<8x1xf32, #tpu.memory_space<vmem>>) attributes {dimension_semantics = [#tpu.dimension_semantics<parallel>, #tpu.dimension_semantics<arbitrary>], iteration_bounds = array<i64: 2, 1>, scalar_prefetch = 0 : i64, scratch_operands = 2 : i64, tpu.core_type = #tpu.core_type<tc>, window_params = [{pipeline_mode = #tpu.pipeline_mode<synchronous>, transform_indices = @transform_0, window_bounds = array<i64: 8, 256>}, {transform_indices = @transform_1, window_bounds = array<i64: 256, 256>}, {transform_indices = @transform_2, window_bounds = array<i64: 1, 256>}, {transform_indices = @transform_3, window_bounds = array<i64: 8, 256>}, {transform_indices = @transform_4, window_bounds = array<i64: 1, 8, 1>}]} {
    %c0_i32 = arith.constant 0 : i32
    %0 = arith.cmpi eq, %arg1, %c0_i32 : i32
    %1 = arith.extui %0 : i1 to i32
    %c0_i32_0 = arith.constant 0 : i32
    %2 = arith.cmpi ne, %1, %c0_i32_0 : i32
    scf.if %2 {
      %cst_20 = arith.constant 0xFF800000 : f32
      %29 = vector.broadcast %cst_20 : f32 to vector<8x1xf32>
      %c0_21 = arith.constant 0 : index
      %c0_22 = arith.constant 0 : index
      %30 = vector.load %arg7[%c0_21, %c0_22] : memref<8x1xf32, #tpu.memory_space<vmem>>, vector<8x1xf32>
      tpu.vector_store %arg7[%c0_21, %c0_22], %29 {strides = array<i32>} : memref<8x1xf32, #tpu.memory_space<vmem>>, vector<8x1xf32>,
      %cst_23 = arith.constant 0.000000e+00 : f32
      %31 = vector.broadcast %cst_23 : f32 to vector<8x1xf32>
      %c0_24 = arith.constant 0 : index
      %c0_25 = arith.constant 0 : index
      %32 = vector.load %arg8[%c0_24, %c0_25] : memref<8x1xf32, #tpu.memory_space<vmem>>, vector<8x1xf32>
      tpu.vector_store %arg8[%c0_24, %c0_25], %31 {strides = array<i32>} : memref<8x1xf32, #tpu.memory_space<vmem>>, vector<8x1xf32>,
    } else {
    }
    %c0 = arith.constant 0 : index
    %c0_1 = arith.constant 0 : index
    %3 = vector.load %arg2[%c0, %c0_1] : memref<8x256xf32, #tpu.memory_space<vmem>>, vector<8x256xf32>
    %c0_2 = arith.constant 0 : index
    %c0_3 = arith.constant 0 : index
    %4 = vector.load %arg3[%c0_2, %c0_3] : memref<256x256xf32, #tpu.memory_space<vmem>>, vector<256x256xf32>
    %cst = arith.constant dense<0.000000e+00> : vector<8x256xf32>
    %5 = tpu.matmul %3, %4, %cst {dimension_numbers = #tpu.dot_dimension_numbers<[1], [0], [0], [1], [0, 0, 1, 1], [], []>} : vector<8x256xf32>, vector<256x256xf32>, vector<8x256xf32> -> vector<8x256xf32>
    %c0_4 = arith.constant 0 : index
    %c0_5 = arith.constant 0 : index
    %6 = vector.load %arg4[%c0_4, %c0_5] : memref<1x256xf32, #tpu.memory_space<vmem>>, vector<1x256xf32>
    %7 = vector.broadcast %6 : vector<1x256xf32> to vector<8x256xf32>
    %8 = arith.addf %5, %7 : vector<8x256xf32>
    %c0_6 = arith.constant 0 : index
    %c0_7 = arith.constant 0 : index
    %9 = vector.load %arg5[%c0_6, %c0_7] : memref<8x256xf32, #tpu.memory_space<vmem>>, vector<8x256xf32>
    tpu.vector_store %arg5[%c0_6, %c0_7], %8 {strides = array<i32>} : memref<8x256xf32, #tpu.memory_space<vmem>>, vector<8x256xf32>,
    %c0_8 = arith.constant 0 : index
    %c0_9 = arith.constant 0 : index
    %10 = vector.load %arg7[%c0_8, %c0_9] : memref<8x1xf32, #tpu.memory_space<vmem>>, vector<8x1xf32>
    %cst_10 = arith.constant dense<0xFF800000> : vector<8xf32>
    %11 = vector.multi_reduction <maximumf>, %8, %cst_10 [1] : vector<8x256xf32> to vector<8xf32>
    %12 = vector.shape_cast %11 : vector<8xf32> to vector<8x1xf32>
    %13 = arith.maximumf %10, %12 : vector<8x1xf32>
    %c0_11 = arith.constant 0 : index
    %c0_12 = arith.constant 0 : index
    %14 = vector.load %arg8[%c0_11, %c0_12] : memref<8x1xf32, #tpu.memory_space<vmem>>, vector<8x1xf32>
    %15 = arith.subf %10, %13 : vector<8x1xf32>
    %16 = math.exp %15 : vector<8x1xf32>
    %17 = arith.mulf %14, %16 : vector<8x1xf32>
    %18 = vector.broadcast %13 : vector<8x1xf32> to vector<8x256xf32>
    %19 = arith.subf %8, %18 : vector<8x256xf32>
    %20 = math.exp %19 : vector<8x256xf32>
    %cst_13 = arith.constant dense<0.000000e+00> : vector<8xf32>
    %21 = vector.multi_reduction <add>, %20, %cst_13 [1] : vector<8x256xf32> to vector<8xf32>
    %22 = vector.shape_cast %21 : vector<8xf32> to vector<8x1xf32>
    %23 = arith.addf %17, %22 : vector<8x1xf32>
    %c0_14 = arith.constant 0 : index
    %c0_15 = arith.constant 0 : index
    %24 = vector.load %arg8[%c0_14, %c0_15] : memref<8x1xf32, #tpu.memory_space<vmem>>, vector<8x1xf32>
    tpu.vector_store %arg8[%c0_14, %c0_15], %23 {strides = array<i32>} : memref<8x1xf32, #tpu.memory_space<vmem>>, vector<8x1xf32>,
    %c0_16 = arith.constant 0 : index
    %c0_17 = arith.constant 0 : index
    %25 = vector.load %arg7[%c0_16, %c0_17] : memref<8x1xf32, #tpu.memory_space<vmem>>, vector<8x1xf32>
    tpu.vector_store %arg7[%c0_16, %c0_17], %13 {strides = array<i32>} : memref<8x1xf32, #tpu.memory_space<vmem>>, vector<8x1xf32>,
    %c0_i32_18 = arith.constant 0 : i32
    %26 = arith.cmpi eq, %arg1, %c0_i32_18 : i32
    %27 = arith.extui %26 : i1 to i32
    %c0_i32_19 = arith.constant 0 : i32
    %28 = arith.cmpi ne, %27, %c0_i32_19 : i32
    scf.if %28 {
      %c0_20 = arith.constant 0 : index
      %c0_21 = arith.constant 0 : index
      %29 = vector.load %arg7[%c0_20, %c0_21] : memref<8x1xf32, #tpu.memory_space<vmem>>, vector<8x1xf32>
      %c0_22 = arith.constant 0 : index
      %c0_23 = arith.constant 0 : index
      %30 = vector.load %arg8[%c0_22, %c0_23] : memref<8x1xf32, #tpu.memory_space<vmem>>, vector<8x1xf32>
      %31 = math.log %30 : vector<8x1xf32>
      %32 = arith.addf %29, %31 : vector<8x1xf32>
      %33 = vector.shape_cast %32 : vector<8x1xf32> to vector<1x8x1xf32>
      %c0_24 = arith.constant 0 : index
      %c0_25 = arith.constant 0 : index
      %c0_26 = arith.constant 0 : index
      %34 = vector.load %arg6[%c0_24, %c0_25, %c0_26] : memref<1x8x1xf32, #tpu.memory_space<vmem>>, vector<1x8x1xf32>
      tpu.vector_store %arg6[%c0_24, %c0_25, %c0_26], %33 {strides = array<i32>} : memref<1x8x1xf32, #tpu.memory_space<vmem>>, vector<1x8x1xf32>,
    } else {
    }
    return
  }
  func.func @transform_0(%arg0: i32, %arg1: i32) -> (i32, i32) {
    %c0_i32 = arith.constant 0 : i32
    %c0_i32_0 = arith.constant 0 : i32
    %c0_i32_1 = arith.constant 0 : i32
    return %c0_i32, %c0_i32_0 : i32, i32
  }
  func.func @transform_1(%arg0: i32, %arg1: i32) -> (i32, i32) {
    %c1_i32 = arith.constant 1 : i32
    %0 = arith.muli %arg0, %c1_i32 : i32
    %1 = arith.addi %0, %arg1 : i32
    %c0_i32 = arith.constant 0 : i32
    %c0_i32_0 = arith.constant 0 : i32
    return %c0_i32, %1 : i32, i32
  }
  func.func @transform_2(%arg0: i32, %arg1: i32) -> (i32, i32) {
    %c1_i32 = arith.constant 1 : i32
    %0 = arith.muli %arg0, %c1_i32 : i32
    %1 = arith.addi %0, %arg1 : i32
    %c0_i32 = arith.constant 0 : i32
    %c0_i32_0 = arith.constant 0 : i32
    return %c0_i32, %1 : i32, i32
  }
  func.func @transform_3(%arg0: i32, %arg1: i32) -> (i32, i32) {
    %c1_i32 = arith.constant 1 : i32
    %0 = arith.muli %arg0, %c1_i32 : i32
    %1 = arith.addi %0, %arg1 : i32
    %c0_i32 = arith.constant 0 : i32
    %c0_i32_0 = arith.constant 0 : i32
    return %c0_i32, %1 : i32, i32
  }
  func.func @transform_4(%arg0: i32, %arg1: i32) -> (i32, i32, i32) {
    %c0_i32 = arith.constant 0 : i32
    %c0_i32_0 = arith.constant 0 : i32
    %c0_i32_1 = arith.constant 0 : i32
    return %arg0, %c0_i32, %c0_i32_0 : i32, i32, i32
  }
}

</mosaic_0001>

<llo_original>
// kernel: rnn_decoder_forward.3
$region0: #{rnn_decoder_forward.3}
  #allocation0 [shape = 'u32[]', space=smem, size = 0x4, offset = 0x4, fixed_abs, tag = 'smem constant byte address 0x4 - core index']
  #allocation1 [shape = 'u32[144,128]{1,0:T(1,128)}', space=vmem, size = 0x12000, scoped, tag = 'internal scratch']
  #allocation2 [shape = 'f32[8,1]{1,0:T(8,128)}', space=vmem, size = 0x1000, scoped, tag = 'scratch operand']
  #allocation3 [shape = 'f32[8,1]{1,0:T(8,128)}', space=vmem, size = 0x1000, scoped, tag = 'scratch operand']
  %s0 = inlined_call_operand.vmem [shape: f32[8,256], index: 0, kind: input, shape index: {}]
  %s1 = inlined_call_operand.vmem [shape: f32[256,512], index: 1, kind: input, shape index: {}]
  %s2 = inlined_call_operand.vmem [shape: f32[1,512], index: 2, kind: input, shape index: {}]
  %s3 = inlined_call_operand.vmem [shape: f32[8,512], index: 3, kind: output, shape index: {0}]
  %s4 = inlined_call_operand.vmem [shape: f32[2,8,1], index: 4, kind: output, shape index: {1}]
  %5 = xla_tuple %s3, %s4
  %s6 = sld [smem:[#allocation0]]
  $region84: #{rnn_decoder_forward.3} parent=0
    _
  %s8 = ssub.s32 1, %s6
  %s9 = scalar_select 0, %s8, %s6
  $region1: #{rnn_decoder_forward.3} parent=0
    #allocation4 [shape = 'u8[524288]{0}', space=vmem, size = 0x80000, scoped, tag = 'input window, operand 1']
    loop: start=0, step=1, limit=4
    $region2: #{rnn_decoder_forward.3} parent=1 // loop_pre_header
      _
    $region3: #{rnn_decoder_forward.3} parent=1 // loop_header
      %s11 = sphi 0, %s15
      %p12 = scmp.ge.s32.totalorder %s11, 4
      %s18 = sphi 0, %s30
      %s19 = sphi 0, %s26
      %s20 = sphi 0, %s18
      %s21 = sphi 0, %s19
      %s22 = sphi 0, %s20
      %s23 = sphi 0, %s21
      %s31 = sphi 0, %s31
      %s33 = sphi 0, %s31
      %s34 = sphi 0, %s33
      %s48 = sphi 0, %s34
      %s56 = sphi 0, %s58
      %s59 = sphi 0, %s56
      %s60 = sphi 0, %s59
      %s76 = sphi 0, %s60
      %s84 = sphi 0, %s86
      %s87 = sphi 0, %s84
      %s88 = sphi 0, %s87
      %s104 = sphi 0, %s88
      %s112 = sphi 0, %s114
      %s115 = sphi 0, %s112
      %s116 = sphi 0, %s115
      %s132 = sphi 0, %s116
      %s138 = sphi 0, %s140
      %s141 = sphi 0, %s138
      %s142 = sphi 0, %s141
      %s158 = sphi 0, %s142
    $region4: #{rnn_decoder_forward.3} parent=1 // loop_header_branch
      %14 = sbr.rel (%p12) target = $region8
    $region5: #{rnn_decoder_forward.3} parent=1 // loop_body
      %s16 = ssub.s32 %s11, 1
      %s17 = ssub.s32 %s11, 2
      %s24 = sadd.s32 1, %s19
      %p25 = scmp.ge.s32.totalorder %s24, 1
      %s26 = scalar_select %p25, 0, %s24
      %s27 = sadd.s32 1, %s18
      %s28 = scalar_select %p25, %s27, %s18
      %p29 = scmp.ge.s32.totalorder %s28, 2
      %s30 = scalar_select %p29, 0, %s28
      %s32 = sadd.s32 %s31, 1
      %p35 = scmp.eq.s32.totalorder %s11, 1
      %p36 = scmp.ne.s32.totalorder %s31, %s33
      %p37 = scmp.eq.s32.totalorder %s11, 0
      %p38 = por %p36, %p37
      %p39 = scmp.ne.s32.totalorder %s31, %s33
      %p40 = scmp.eq.s32.totalorder %s16, 1
      %p41 = por %p39, %p40
      %p42 = scmp.ne.s32.totalorder %s33, %s34
      %p43 = scmp.eq.s32.totalorder %s16, 0
      %p44 = por %p42, %p43
      %p45 = scmp.ne.s32.totalorder %s33, %s34
      %p46 = scmp.eq.s32.totalorder %s17, 1
      %p47 = por %p45, %p46
      %p49 = scmp.ne.s32.totalorder %s34, %s48
      %p50 = scmp.eq.s32.totalorder %s17, 0
      %p51 = por %p49, %p50
      %s52 = sadd.s32 %s18, %s19
      %s53 = sadd.s32 %s30, %s26
      %s54 = ssub.s32 %s52, %s53
      %p55 = scmp.eq.s32.totalorder %s54, 0
      %s57 = sadd.s32 %s56, 1
      %s58 = scalar_select %p55, %s56, %s57
      %p61 = pneg %p55
      %p62 = scmp.eq.s32.totalorder %s11, 1
      %p63 = por %p61, %p62
      %p64 = scmp.ne.s32.totalorder %s56, %s59
      %p65 = scmp.eq.s32.totalorder %s11, 0
      %p66 = por %p64, %p65
      %p67 = scmp.ne.s32.totalorder %s56, %s59
      %p68 = scmp.eq.s32.totalorder %s16, 1
      %p69 = por %p67, %p68
      %p70 = scmp.ne.s32.totalorder %s59, %s60
      %p71 = scmp.eq.s32.totalorder %s16, 0
      %p72 = por %p70, %p71
      %p73 = scmp.ne.s32.totalorder %s59, %s60
      %p74 = scmp.eq.s32.totalorder %s17, 1
      %p75 = por %p73, %p74
      %p77 = scmp.ne.s32.totalorder %s60, %s76
      %p78 = scmp.eq.s32.totalorder %s17, 0
      %p79 = por %p77, %p78
      %s80 = sadd.s32 %s18, %s19
      %s81 = sadd.s32 %s30, %s26
      %s82 = ssub.s32 %s80, %s81
      %p83 = scmp.eq.s32.totalorder %s82, 0
      %s85 = sadd.s32 %s84, 1
      %s86 = scalar_select %p83, %s84, %s85
      %p89 = pneg %p83
      %p90 = scmp.eq.s32.totalorder %s11, 1
      %p91 = por %p89, %p90
      %p92 = scmp.ne.s32.totalorder %s84, %s87
      %p93 = scmp.eq.s32.totalorder %s11, 0
      %p94 = por %p92, %p93
      %p95 = scmp.ne.s32.totalorder %s84, %s87
      %p96 = scmp.eq.s32.totalorder %s16, 1
      %p97 = por %p95, %p96
      %p98 = scmp.ne.s32.totalorder %s87, %s88
      %p99 = scmp.eq.s32.totalorder %s16, 0
      %p100 = por %p98, %p99
      %p101 = scmp.ne.s32.totalorder %s87, %s88
      %p102 = scmp.eq.s32.totalorder %s17, 1
      %p103 = por %p101, %p102
      %p105 = scmp.ne.s32.totalorder %s88, %s104
      %p106 = scmp.eq.s32.totalorder %s17, 0
      %p107 = por %p105, %p106
      %s108 = sadd.s32 %s18, %s19
      %s109 = sadd.s32 %s30, %s26
      %s110 = ssub.s32 %s108, %s109
      %p111 = scmp.eq.s32.totalorder %s110, 0
      %s113 = sadd.s32 %s112, 1
      %s114 = scalar_select %p111, %s112, %s113
      %p117 = pneg %p111
      %p118 = scmp.eq.s32.totalorder %s11, 1
      %p119 = por %p117, %p118
      %p120 = scmp.ne.s32.totalorder %s112, %s115
      %p121 = scmp.eq.s32.totalorder %s11, 0
      %p122 = por %p120, %p121
      %p123 = scmp.ne.s32.totalorder %s112, %s115
      %p124 = scmp.eq.s32.totalorder %s16, 1
      %p125 = por %p123, %p124
      %p126 = scmp.ne.s32.totalorder %s115, %s116
      %p127 = scmp.eq.s32.totalorder %s16, 0
      %p128 = por %p126, %p127
      %p129 = scmp.ne.s32.totalorder %s115, %s116
      %p130 = scmp.eq.s32.totalorder %s17, 1
      %p131 = por %p129, %p130
      %p133 = scmp.ne.s32.totalorder %s116, %s132
      %p134 = scmp.eq.s32.totalorder %s17, 0
      %p135 = por %p133, %p134
      %s136 = ssub.s32 %s18, %s30
      %p137 = scmp.eq.s32.totalorder %s136, 0
      %s139 = sadd.s32 %s138, 1
      %s140 = scalar_select %p137, %s138, %s139
      %p143 = pneg %p137
      %p144 = scmp.eq.s32.totalorder %s11, 1
      %p145 = por %p143, %p144
      %p146 = scmp.ne.s32.totalorder %s138, %s141
      %p147 = scmp.eq.s32.totalorder %s11, 0
      %p148 = por %p146, %p147
      %p149 = scmp.ne.s32.totalorder %s138, %s141
      %p150 = scmp.eq.s32.totalorder %s16, 1
      %p151 = por %p149, %p150
      %p152 = scmp.ne.s32.totalorder %s141, %s142
      %p153 = scmp.eq.s32.totalorder %s16, 0
      %p154 = por %p152, %p153
      %p155 = scmp.ne.s32.totalorder %s141, %s142
      %p156 = scmp.eq.s32.totalorder %s17, 1
      %p157 = por %p155, %p156
      %p159 = scmp.ne.s32.totalorder %s142, %s158
      %p160 = scmp.eq.s32.totalorder %s17, 0
      %p161 = por %p159, %p160
      %p162 = scmp.le.s32.totalorder 1, %s11
      %p163 = scmp.lt.s32.totalorder %s11, 3
      %p164 = pnand %p162, %p163
      %p165 = pneg %p164
      // Predicated region
      $region9: #{rnn_decoder_forward.3} parent=5 // pred_check
        _
      $region10: #{rnn_decoder_forward.3} parent=5 // pred_check_branch
        %167 = sbr.rel (%p164) target = $region12
      $region11: #{rnn_decoder_forward.3} parent=5 // pred_region
        %s168 = ssub.s32 %s11, 1
        // Predicated region
        $region13: #{rnn_decoder_forward.3} parent=11 // pred_check
          %p169 = pneg %p44
        $region14: #{rnn_decoder_forward.3} parent=11 // pred_check_branch
          %171 = sbr.rel (%p169) target = $region16
        $region15: #{rnn_decoder_forward.3} parent=11 // pred_region
          _
        $region16: #{rnn_decoder_forward.3} parent=11 // pred_fallthru
          _
      $region12: #{rnn_decoder_forward.3} parent=5 // pred_fallthru
        _
      %p172 = scmp.lt.s32.totalorder %s11, 2
      // Predicated region
      $region17: #{rnn_decoder_forward.3} parent=5 // pred_check
        %p173 = pneg %p172
      $region18: #{rnn_decoder_forward.3} parent=5 // pred_check_branch
        %175 = sbr.rel (%p173) target = $region20
      $region19: #{rnn_decoder_forward.3} parent=5 // pred_region
        // Predicated region
        $region21: #{rnn_decoder_forward.3} parent=19 // pred_check
          %p176 = pneg %p66
        $region22: #{rnn_decoder_forward.3} parent=19 // pred_check_branch
          %178 = sbr.rel (%p176) target = $region24
        $region23: #{rnn_decoder_forward.3} parent=19 // pred_region
          %s179 = sand.u32 %s56, 1
          %s180 = sand.u32 %s56, 1
          %s181 = smul.addr %s180, 512
          %s182 = scalar_lea.vmem [#allocation4], %s181
          %s183 = sadd.s32 %s18, %s19
          %s184 = smul.u32 2, %s183
          %s185 = smul.addr %s184, 8
          %s186 = scalar_lea.vmem %s1, %s185
          // Predicated region
          $region25: #{rnn_decoder_forward.3} parent=23 // pred_check
            _
          $region26: #{rnn_decoder_forward.3} parent=23 // pred_check_branch
            %188 = sbr.rel (0) target = $region28
          $region27: #{rnn_decoder_forward.3} parent=23 // pred_region
            // Predicated region
            $region29: #{rnn_decoder_forward.3} parent=27 // pred_check
              _
            $region30: #{rnn_decoder_forward.3} parent=27 // pred_check_branch
              %190 = sbr.rel (0) target = $region32
            $region31: #{rnn_decoder_forward.3} parent=27 // pred_region
              loop: start=0, step=1, limit=1
              $region33: #{rnn_decoder_forward.3} parent=31 // loop_pre_header
                _
              $region34: #{rnn_decoder_forward.3} parent=31 // loop_header
                %s192 = sphi 0, %s196
                %p193 = scmp.ge.s32.totalorder %s192, 1
                %s197 = sphi %s186, %s186
                %s198 = sphi %s182, %s182
              $region35: #{rnn_decoder_forward.3} parent=31 // loop_header_branch
                %195 = sbr.rel (%p193) target = $region39
              $region36: #{rnn_decoder_forward.3} parent=31 // loop_body
                %v199 = vld [vmem:[%s197] sm:$0xff]
                %200 = vst [vmem:[%s198] sm:$0xff] %v199
                %v201 = vld [vmem:[%s197 + $0x8] sm:$0xff]
                %202 = vst [vmem:[%s198 + $0x8] sm:$0xff] %v201
                %v203 = vld [vmem:[%s197 + $0x20] sm:$0xff]
                %204 = vst [vmem:[%s198 + $0x10] sm:$0xff] %v203
                %v205 = vld [vmem:[%s197 + $0x28] sm:$0xff]
                %206 = vst [vmem:[%s198 + $0x18] sm:$0xff] %v205
                %v207 = vld [vmem:[%s197 + $0x40] sm:$0xff]
                %208 = vst [vmem:[%s198 + $0x20] sm:$0xff] %v207
                %v209 = vld [vmem:[%s197 + $0x48] sm:$0xff]
                %210 = vst [vmem:[%s198 + $0x28] sm:$0xff] %v209
                %v211 = vld [vmem:[%s197 + $0x60] sm:$0xff]
                %212 = vst [vmem:[%s198 + $0x30] sm:$0xff] %v211
                %v213 = vld [vmem:[%s197 + $0x68] sm:$0xff]
                %214 = vst [vmem:[%s198 + $0x38] sm:$0xff] %v213
                %v215 = vld [vmem:[%s197 + $0x80] sm:$0xff]
                %216 = vst [vmem:[%s198 + $0x40] sm:$0xff] %v215
                %v217 = vld [vmem:[%s197 + $0x88] sm:$0xff]
                %218 = vst [vmem:[%s198 + $0x48] sm:$0xff] %v217
                %v219 = vld [vmem:[%s197 + $0xa0] sm:$0xff]
                %220 = vst [vmem:[%s198 + $0x50] sm:$0xff] %v219
                %v221 = vld [vmem:[%s197 + $0xa8] sm:$0xff]
                %222 = vst [vmem:[%s198 + $0x58] sm:$0xff] %v221
                %v223 = vld [vmem:[%s197 + $0xc0] sm:$0xff]
                %224 = vst [vmem:[%s198 + $0x60] sm:$0xff] %v223
                %v225 = vld [vmem:[%s197 + $0xc8] sm:$0xff]
                %226 = vst [vmem:[%s198 + $0x68] sm:$0xff] %v225
                %v227 = vld [vmem:[%s197 + $0xe0] sm:$0xff]
                %228 = vst [vmem:[%s198 + $0x70] sm:$0xff] %v227
                %v229 = vld [vmem:[%s197 + $0xe8] sm:$0xff]
                %230 = vst [vmem:[%s198 + $0x78] sm:$0xff] %v229
                %v231 = vld [vmem:[%s197 + $0x100] sm:$0xff]
                %232 = vst [vmem:[%s198 + $0x80] sm:$0xff] %v231
                %v233 = vld [vmem:[%s197 + $0x108] sm:$0xff]
                %234 = vst [vmem:[%s198 + $0x88] sm:$0xff] %v233
                %v235 = vld [vmem:[%s197 + $0x120] sm:$0xff]
                %236 = vst [vmem:[%s198 + $0x90] sm:$0xff] %v235
                %v237 = vld [vmem:[%s197 + $0x128] sm:$0xff]
                %238 = vst [vmem:[%s198 + $0x98] sm:$0xff] %v237
                %v239 = vld [vmem:[%s197 + $0x140] sm:$0xff]
                %240 = vst [vmem:[%s198 + $0xa0] sm:$0xff] %v239
                %v241 = vld [vmem:[%s197 + $0x148] sm:$0xff]
                %242 = vst [vmem:[%s198 + $0xa8] sm:$0xff] %v241
                %v243 = vld [vmem:[%s197 + $0x160] sm:$0xff]
                %244 = vst [vmem:[%s198 + $0xb0] sm:$0xff] %v243
                %v245 = vld [vmem:[%s197 + $0x168] sm:$0xff]
                %246 = vst [vmem:[%s198 + $0xb8] sm:$0xff] %v245
                %v247 = vld [vmem:[%s197 + $0x180] sm:$0xff]
                %248 = vst [vmem:[%s198 + $0xc0] sm:$0xff] %v247
                %v249 = vld [vmem:[%s197 + $0x188] sm:$0xff]
                %250 = vst [vmem:[%s198 + $0xc8] sm:$0xff] %v249
                %v251 = vld [vmem:[%s197 + $0x1a0] sm:$0xff]
                %252 = vst [vmem:[%s198 + $0xd0] sm:$0xff] %v251
                %v253 = vld [vmem:[%s197 + $0x1a8] sm:$0xff]
                %254 = vst [vmem:[%s198 + $0xd8] sm:$0xff] %v253
                %v255 = vld [vmem:[%s197 + $0x1c0] sm:$0xff]
                %256 = vst [vmem:[%s198 + $0xe0] sm:$0xff] %v255
                %v257 = vld [vmem:[%s197 + $0x1c8] sm:$0xff]
                %258 = vst [vmem:[%s198 + $0xe8] sm:$0xff] %v257
                %v259 = vld [vmem:[%s197 + $0x1e0] sm:$0xff]
                %260 = vst [vmem:[%s198 + $0xf0] sm:$0xff] %v259
                %v261 = vld [vmem:[%s197 + $0x1e8] sm:$0xff]
                %262 = vst [vmem:[%s198 + $0xf8] sm:$0xff] %v261
                %v263 = vld [vmem:[%s197 + $0x200] sm:$0xff]
                %264 = vst [vmem:[%s198 + $0x100] sm:$0xff] %v263
                %v265 = vld [vmem:[%s197 + $0x208] sm:$0xff]
                %266 = vst [vmem:[%s198 + $0x108] sm:$0xff] %v265
                %v267 = vld [vmem:[%s197 + $0x220] sm:$0xff]
                %268 = vst [vmem:[%s198 + $0x110] sm:$0xff] %v267
                %v269 = vld [vmem:[%s197 + $0x228] sm:$0xff]
                %270 = vst [vmem:[%s198 + $0x118] sm:$0xff] %v269
                %v271 = vld [vmem:[%s197 + $0x240] sm:$0xff]
                %272 = vst [vmem:[%s198 + $0x120] sm:$0xff] %v271
                %v273 = vld [vmem:[%s197 + $0x248] sm:$0xff]
                %274 = vst [vmem:[%s198 + $0x128] sm:$0xff] %v273
                %v275 = vld [vmem:[%s197 + $0x260] sm:$0xff]
                %276 = vst [vmem:[%s198 + $0x130] sm:$0xff] %v275
                %v277 = vld [vmem:[%s197 + $0x268] sm:$0xff]
                %278 = vst [vmem:[%s198 + $0x138] sm:$0xff] %v277
                %v279 = vld [vmem:[%s197 + $0x280] sm:$0xff]
                %280 = vst [vmem:[%s198 + $0x140] sm:$0xff] %v279
                %v281 = vld [vmem:[%s197 + $0x288] sm:$0xff]
                %282 = vst [vmem:[%s198 + $0x148] sm:$0xff] %v281
                %v283 = vld [vmem:[%s197 + $0x2a0] sm:$0xff]
                %284 = vst [vmem:[%s198 + $0x150] sm:$0xff] %v283
                %v285 = vld [vmem:[%s197 + $0x2a8] sm:$0xff]
                %286 = vst [vmem:[%s198 + $0x158] sm:$0xff] %v285
                %v287 = vld [vmem:[%s197 + $0x2c0] sm:$0xff]
                %288 = vst [vmem:[%s198 + $0x160] sm:$0xff] %v287
                %v289 = vld [vmem:[%s197 + $0x2c8] sm:$0xff]
                %290 = vst [vmem:[%s198 + $0x168] sm:$0xff] %v289
                %v291 = vld [vmem:[%s197 + $0x2e0] sm:$0xff]
                %292 = vst [vmem:[%s198 + $0x170] sm:$0xff] %v291
                %v293 = vld [vmem:[%s197 + $0x2e8] sm:$0xff]
                %294 = vst [vmem:[%s198 + $0x178] sm:$0xff] %v293
                %v295 = vld [vmem:[%s197 + $0x300] sm:$0xff]
                %296 = vst [vmem:[%s198 + $0x180] sm:$0xff] %v295
                %v297 = vld [vmem:[%s197 + $0x308] sm:$0xff]
                %298 = vst [vmem:[%s198 + $0x188] sm:$0xff] %v297
                %v299 = vld [vmem:[%s197 + $0x320] sm:$0xff]
                %300 = vst [vmem:[%s198 + $0x190] sm:$0xff] %v299
                %v301 = vld [vmem:[%s197 + $0x328] sm:$0xff]
                %302 = vst [vmem:[%s198 + $0x198] sm:$0xff] %v301
                %v303 = vld [vmem:[%s197 + $0x340] sm:$0xff]
                %304 = vst [vmem:[%s198 + $0x1a0] sm:$0xff] %v303
                %v305 = vld [vmem:[%s197 + $0x348] sm:$0xff]
                %306 = vst [vmem:[%s198 + $0x1a8] sm:$0xff] %v305
                %v307 = vld [vmem:[%s197 + $0x360] sm:$0xff]
                %308 = vst [vmem:[%s198 + $0x1b0] sm:$0xff] %v307
                %v309 = vld [vmem:[%s197 + $0x368] sm:$0xff]
                %310 = vst [vmem:[%s198 + $0x1b8] sm:$0xff] %v309
                %v311 = vld [vmem:[%s197 + $0x380] sm:$0xff]
                %312 = vst [vmem:[%s198 + $0x1c0] sm:$0xff] %v311
                %v313 = vld [vmem:[%s197 + $0x388] sm:$0xff]
                %314 = vst [vmem:[%s198 + $0x1c8] sm:$0xff] %v313
                %v315 = vld [vmem:[%s197 + $0x3a0] sm:$0xff]
                %316 = vst [vmem:[%s198 + $0x1d0] sm:$0xff] %v315
                %v317 = vld [vmem:[%s197 + $0x3a8] sm:$0xff]
                %318 = vst [vmem:[%s198 + $0x1d8] sm:$0xff] %v317
                %v319 = vld [vmem:[%s197 + $0x3c0] sm:$0xff]
                %320 = vst [vmem:[%s198 + $0x1e0] sm:$0xff] %v319
                %v321 = vld [vmem:[%s197 + $0x3c8] sm:$0xff]
                %322 = vst [vmem:[%s198 + $0x1e8] sm:$0xff] %v321
                %v323 = vld [vmem:[%s197 + $0x3e0] sm:$0xff]
                %324 = vst [vmem:[%s198 + $0x1f0] sm:$0xff] %v323
                %v325 = vld [vmem:[%s197 + $0x3e8] sm:$0xff]
                %326 = vst [vmem:[%s198 + $0x1f8] sm:$0xff] %v325
              $region37: #{rnn_decoder_forward.3} parent=31 // loop_footer
                %s196 = sadd.s32 1, %s192
              $region38: #{rnn_decoder_forward.3} parent=31 // loop_footer_branch
                %191 = sbr.rel target = $region34
              $region39: #{rnn_decoder_forward.3} parent=31 // loop_exit
                _
            $region32: #{rnn_decoder_forward.3} parent=27 // pred_fallthru
              _
            // Predicated region
            $region40: #{rnn_decoder_forward.3} parent=27 // pred_check
              _
            $region41: #{rnn_decoder_forward.3} parent=27 // pred_check_branch
              %328 = sbr.rel target = $region43
            $region42: #{rnn_decoder_forward.3} parent=27 // pred_region
              _
            $region43: #{rnn_decoder_forward.3} parent=27 // pred_fallthru
              _
          $region28: #{rnn_decoder_forward.3} parent=23 // pred_fallthru
            _
          %329 = vnop
        $region24: #{rnn_decoder_forward.3} parent=19 // pred_fallthru
          _
        // Predicated region
        $region44: #{rnn_decoder_forward.3} parent=19 // pred_check
          %p330 = pneg %p94
        $region45: #{rnn_decoder_forward.3} parent=19 // pred_check_branch
          %332 = sbr.rel (%p330) target = $region47
        $region46: #{rnn_decoder_forward.3} parent=19 // pred_region
          %s333 = sadd.s32 %s18, %s19
          %s334 = smul.u32 2, %s333
          %p335 = scmp.lt.s32.totalorder %s334, 3
          %s336 = scalar_select %p335, %s334, 3
          %s337 = scalar_lea.vmem %s2, %s336
          %s338 = sadd.s32 %s18, %s19
          %s339 = smul.u32 2, %s338
        $region47: #{rnn_decoder_forward.3} parent=19 // pred_fallthru
          _
      $region20: #{rnn_decoder_forward.3} parent=5 // pred_fallthru
        _
      %p340 = scmp.le.s32.totalorder 1, %s11
      %p341 = scmp.lt.s32.totalorder %s11, 3
      %p342 = pnand %p340, %p341
      %p343 = pneg %p342
      // Predicated region
      $region48: #{rnn_decoder_forward.3} parent=5 // pred_check
        _
      $region49: #{rnn_decoder_forward.3} parent=5 // pred_check_branch
        %345 = sbr.rel (%p342) target = $region51
      $region50: #{rnn_decoder_forward.3} parent=5 // pred_region
        %s346 = ssub.s32 %s11, 1
        %s347 = sand.u32 %s59, 1
        %s348 = sand.u32 %s59, 1
        %s349 = smul.addr %s348, 512
        %s350 = scalar_lea.vmem [#allocation4], %s349
        // Predicated region
        $region52: #{rnn_decoder_forward.3} parent=50 // pred_check
          %p351 = pneg %p72
        $region53: #{rnn_decoder_forward.3} parent=50 // pred_check_branch
          %353 = sbr.rel (%p351) target = $region55
        $region54: #{rnn_decoder_forward.3} parent=50 // pred_region
          _
        $region55: #{rnn_decoder_forward.3} parent=50 // pred_fallthru
          _
        %p354 = pneg %p44
        %p355 = pneg %p41
        %s356 = sand.u32 %s59, 1
        %s357 = sand.u32 %s59, 1
        %s358 = smul.addr %s357, 512
        %s359 = scalar_lea.vmem [#allocation4], %s358
        %p360 = pneg %p72
        %p361 = pneg %p69
        %s362 = sadd.s32 %s20, %s21
        %s363 = smul.u32 2, %s362
        %p364 = scmp.lt.s32.totalorder %s363, 3
        %s365 = scalar_select %p364, %s363, 3
        %s366 = scalar_lea.vmem %s2, %s365
        %p367 = pneg %p100
        %p368 = pneg %p97
        %p369 = pneg %p128
        %p370 = pneg %p125
        %s371 = sadd.s32 %s20, %s21
        %s372 = smul.u32 2, %s371
        %p373 = scmp.lt.s32.totalorder %s372, 3
        %s374 = scalar_select %p373, %s372, 3
        %s375 = smul.addr %s374, 8
        %s376 = scalar_lea.vmem %s3, %s375
        %p377 = pneg %p154
        %p378 = pneg %p151
        %p379 = scmp.lt.s32.totalorder %s20, 1
        %s380 = scalar_select %p379, %s20, 1
        %s381 = smul.addr %s380, 8
        %s382 = scalar_lea.vmem %s4, %s381
        %s383 = sadd.s32 %s20, %s21
        %s384 = smul.u32 2, %s383
        %s385 = sadd.s32 %s20, %s21
        %s386 = smul.u32 2, %s385
        %p387 = scmp.lt.s32.totalorder %s386, 3
        %s388 = scalar_select %p387, %s386, 3
        %s389 = scalar_lea.vmem %s2, %s388
        %s390 = sadd.s32 %s20, %s21
        %s391 = smul.u32 2, %s390
        %s392 = sadd.s32 %s20, %s21
        %s393 = smul.u32 2, %s392
        %p394 = scmp.lt.s32.totalorder %s393, 3
        %s395 = scalar_select %p394, %s393, 3
        %s396 = smul.addr %s395, 8
        %s397 = scalar_lea.vmem %s3, %s396
        %s398 = sadd.s32 %s20, %s21
        %s399 = smul.u32 2, %s398
        %p400 = scmp.lt.s32.totalorder %s20, 1
        %s401 = scalar_select %p400, %s20, 1
        %s402 = smul.addr %s401, 8
        %s403 = scalar_lea.vmem %s4, %s402
        %p404 = scmp.eq.s32.totalorder %s21, 0
        // Predicated region
        $region56: #{rnn_decoder_forward.3} parent=50 // pred_check
          %p405 = pneg %p404
        $region57: #{rnn_decoder_forward.3} parent=50 // pred_check_branch
          %407 = sbr.rel (%p405) target = $region59
        $region58: #{rnn_decoder_forward.3} parent=50 // pred_region
          %vm408 = vcmask 7168
          %409 = vst.msk [vmem:[#allocation2] sm:$0xff] %vm408, -inf
          %410 = vst.msk [vmem:[#allocation3] sm:$0xff] %vm408, 0.0
        $region59: #{rnn_decoder_forward.3} parent=50 // pred_fallthru
          _
        %v411 = vld [vmem:[%s0] sm:$0xff]
        %v412 = vld [vmem:[%s0 + $0x8] sm:$0xff]
        %v413 = vld [vmem:[%s350] sm:$0xff]
        %v414 = vld [vmem:[%s350 + $0x8] sm:$0xff]
        %v415 = vld [vmem:[%s350 + $0x10] sm:$0xff]
        %v416 = vld [vmem:[%s350 + $0x18] sm:$0xff]
        %v417 = vld [vmem:[%s350 + $0x20] sm:$0xff]
        %v418 = vld [vmem:[%s350 + $0x28] sm:$0xff]
        %v419 = vld [vmem:[%s350 + $0x30] sm:$0xff]
        %v420 = vld [vmem:[%s350 + $0x38] sm:$0xff]
        %v421 = vld [vmem:[%s350 + $0x40] sm:$0xff]
        %v422 = vld [vmem:[%s350 + $0x48] sm:$0xff]
        %v423 = vld [vmem:[%s350 + $0x50] sm:$0xff]
        %v424 = vld [vmem:[%s350 + $0x58] sm:$0xff]
        %v425 = vld [vmem:[%s350 + $0x60] sm:$0xff]
        %v426 = vld [vmem:[%s350 + $0x68] sm:$0xff]
        %v427 = vld [vmem:[%s350 + $0x70] sm:$0xff]
        %v428 = vld [vmem:[%s350 + $0x78] sm:$0xff]
        %v429 = vld [vmem:[%s350 + $0x80] sm:$0xff]
        %v430 = vld [vmem:[%s350 + $0x88] sm:$0xff]
        %v431 = vld [vmem:[%s350 + $0x90] sm:$0xff]
        %v432 = vld [vmem:[%s350 + $0x98] sm:$0xff]
        %v433 = vld [vmem:[%s350 + $0xa0] sm:$0xff]
        %v434 = vld [vmem:[%s350 + $0xa8] sm:$0xff]
        %v435 = vld [vmem:[%s350 + $0xb0] sm:$0xff]
        %v436 = vld [vmem:[%s350 + $0xb8] sm:$0xff]
        %v437 = vld [vmem:[%s350 + $0xc0] sm:$0xff]
        %v438 = vld [vmem:[%s350 + $0xc8] sm:$0xff]
        %v439 = vld [vmem:[%s350 + $0xd0] sm:$0xff]
        %v440 = vld [vmem:[%s350 + $0xd8] sm:$0xff]
        %v441 = vld [vmem:[%s350 + $0xe0] sm:$0xff]
        %v442 = vld [vmem:[%s350 + $0xe8] sm:$0xff]
        %v443 = vld [vmem:[%s350 + $0xf0] sm:$0xff]
        %v444 = vld [vmem:[%s350 + $0xf8] sm:$0xff]
        %v445 = vld [vmem:[%s350 + $0x100] sm:$0xff]
        %v446 = vld [vmem:[%s350 + $0x108] sm:$0xff]
        %v447 = vld [vmem:[%s350 + $0x110] sm:$0xff]
        %v448 = vld [vmem:[%s350 + $0x118] sm:$0xff]
        %v449 = vld [vmem:[%s350 + $0x120] sm:$0xff]
        %v450 = vld [vmem:[%s350 + $0x128] sm:$0xff]
        %v451 = vld [vmem:[%s350 + $0x130] sm:$0xff]
        %v452 = vld [vmem:[%s350 + $0x138] sm:$0xff]
        %v453 = vld [vmem:[%s350 + $0x140] sm:$0xff]
        %v454 = vld [vmem:[%s350 + $0x148] sm:$0xff]
        %v455 = vld [vmem:[%s350 + $0x150] sm:$0xff]
        %v456 = vld [vmem:[%s350 + $0x158] sm:$0xff]
        %v457 = vld [vmem:[%s350 + $0x160] sm:$0xff]
        %v458 = vld [vmem:[%s350 + $0x168] sm:$0xff]
        %v459 = vld [vmem:[%s350 + $0x170] sm:$0xff]
        %v460 = vld [vmem:[%s350 + $0x178] sm:$0xff]
        %v461 = vld [vmem:[%s350 + $0x180] sm:$0xff]
        %v462 = vld [vmem:[%s350 + $0x188] sm:$0xff]
        %v463 = vld [vmem:[%s350 + $0x190] sm:$0xff]
        %v464 = vld [vmem:[%s350 + $0x198] sm:$0xff]
        %v465 = vld [vmem:[%s350 + $0x1a0] sm:$0xff]
        %v466 = vld [vmem:[%s350 + $0x1a8] sm:$0xff]
        %v467 = vld [vmem:[%s350 + $0x1b0] sm:$0xff]
        %v468 = vld [vmem:[%s350 + $0x1b8] sm:$0xff]
        %v469 = vld [vmem:[%s350 + $0x1c0] sm:$0xff]
        %v470 = vld [vmem:[%s350 + $0x1c8] sm:$0xff]
        %v471 = vld [vmem:[%s350 + $0x1d0] sm:$0xff]
        %v472 = vld [vmem:[%s350 + $0x1d8] sm:$0xff]
        %v473 = vld [vmem:[%s350 + $0x1e0] sm:$0xff]
        %v474 = vld [vmem:[%s350 + $0x1e8] sm:$0xff]
        %v475 = vld [vmem:[%s350 + $0x1f0] sm:$0xff]
        %v476 = vld [vmem:[%s350 + $0x1f8] sm:$0xff]
        %v477 = vld [vmem:[%s389] sm:$0x3]
        %v479 = vlaneseq
        %v480 = vshrl.u32 %v479, 7
        %v481 = vsub.s32 0, %v480
        %v482 = vrot.slane %v477, %v481
        %v483 = vlaneseq
        %v484 = vshrl.u32 %v483, 7
        %v485 = vsub.s32 1, %v484
        %v486 = vrot.slane %v477, %v485
        %489 = vmatprep.subr.mxu0 %v444
        %490 = vmatpush1.msra.mxu0 %v443
        %491 = vmatprep.subr.mxu0 %v442
        %492 = vmatpush1.msra.mxu0 %v441
        %493 = vmatprep.subr.mxu0 %v440
        %494 = vmatpush1.msra.mxu0 %v439
        %495 = vmatprep.subr.mxu0 %v438
        %496 = vmatpush1.msra.mxu0 %v437
        %497 = vmatprep.subr.mxu0 %v436
        %498 = vmatpush1.msra.mxu0 %v435
        %499 = vmatprep.subr.mxu0 %v434
        %500 = vmatpush1.msra.mxu0 %v433
        %501 = vmatprep.subr.mxu0 %v432
        %502 = vmatpush1.msra.mxu0 %v431
        %503 = vmatprep.subr.mxu0 %v430
        %504 = vmatpush1.msra.mxu0 %v429
        %505 = vmatprep.subr.mxu0 %v428
        %506 = vmatpush1.msra.mxu0 %v427
        %507 = vmatprep.subr.mxu0 %v426
        %508 = vmatpush1.msra.mxu0 %v425
        %509 = vmatprep.subr.mxu0 %v424
        %510 = vmatpush1.msra.mxu0 %v423
        %511 = vmatprep.subr.mxu0 %v422
        %512 = vmatpush1.msra.mxu0 %v421
        %513 = vmatprep.subr.mxu0 %v420
        %514 = vmatpush1.msra.mxu0 %v419
        %515 = vmatprep.subr.mxu0 %v418
        %516 = vmatpush1.msra.mxu0 %v417
        %517 = vmatprep.subr.mxu0 %v416
        %518 = vmatpush1.msra.mxu0 %v415
        %519 = vmatprep.subr.mxu0 %v414
        %520 = vmatpush1.msra.mxu0 %v413
        %521 = vmatprep.subr.mxu0 %v476
        %522 = vmatpush2.msra.mxu0 %v475
        %523 = vmatprep.subr.mxu0 %v474
        %524 = vmatpush2.msra.mxu0 %v473
        %525 = vmatprep.subr.mxu0 %v472
        %526 = vmatpush2.msra.mxu0 %v471
        %527 = vmatprep.subr.mxu0 %v470
        %528 = vmatpush2.msra.mxu0 %v469
        %529 = vmatprep.subr.mxu0 %v468
        %530 = vmatpush2.msra.mxu0 %v467
        %531 = vmatprep.subr.mxu0 %v466
        %532 = vmatpush2.msra.mxu0 %v465
        %533 = vmatprep.subr.mxu0 %v464
        %534 = vmatpush2.msra.mxu0 %v463
        %535 = vmatprep.subr.mxu0 %v462
        %536 = vmatpush2.msra.mxu0 %v461
        %537 = vmatprep.subr.mxu0 %v460
        %538 = vmatpush2.msra.mxu0 %v459
        %539 = vmatprep.subr.mxu0 %v458
        %540 = vmatpush2.msra.mxu0 %v457
        %541 = vmatprep.subr.mxu0 %v456
        %542 = vmatpush2.msra.mxu0 %v455
        %543 = vmatprep.subr.mxu0 %v454
        %544 = vmatpush2.msra.mxu0 %v453
        %545 = vmatprep.subr.mxu0 %v452
        %546 = vmatpush2.msra.mxu0 %v451
        %547 = vmatprep.subr.mxu0 %v450
        %548 = vmatpush2.msra.mxu0 %v449
        %549 = vmatprep.subr.mxu0 %v448
        %550 = vmatpush2.msra.mxu0 %v447
        %551 = vmatprep.subr.mxu0 %v446
        %552 = vmatpush2.msra.mxu0 %v445
        %553 = vmatprep.mubr.f32.mxu0 %v412
        %554 = vmatmul.mubr.f32.gmra.mxu0 %v411
        %v555 = vpop.f32.mrf.mxu0
        %v556 = vadd.f32 %v482, %v555
        %v557 = vpop.f32.mrf.mxu0
        %v558 = vadd.f32 %v486, %v557
        %559 = vdwg.mxu0
        %560 = vst [vmem:[%s397] sm:$0xff] %v556
        %561 = vst [vmem:[%s397 + $0x8] sm:$0xff] %v558
        %v562 = vld [vmem:[#allocation2] sm:$0xff]
        %v563 = vmax.f32 %v556, %v558
        %564 = vmax.xlane.f32.xlu0 %v563
        %v565 = vpop.xlane.xlu0 %564
        %v566 = vmax.f32 %v562, %v565
        %v567 = vld [vmem:[#allocation3] sm:$0xff]
        %v568 = vsub.f32 %v562, %v566
        %v569 = vmul.f32 %v568, 1.442695
        %v570 = vpow.pop %v569
        %v571 = vmul.f32 %v567, %v570
        %573 = vset.pattern.permute.xlu0 0
        %574 = vperm.xlu0 %573, %v566
        %v575 = vpop.permute.xlu0 %574
        %v577 = vsub.f32 %v556, %v575
        %v578 = vsub.f32 %v558, %v575
        %v579 = vmul.f32 %v577, 1.442695
        %v580 = vpow.pop %v579
        %v581 = vmul.f32 %v578, 1.442695
        %v582 = vpow.pop %v581
        %v583 = vadd.f32 %v580, %v582
        %584 = vadd.xlane.f32.xlu0 %v583
        %v585 = vpop.xlane.xlu0 %584
        %v586 = vadd.f32 %v571, %v585
        %vm587 = vcmask 7168
        %588 = vst.msk [vmem:[#allocation3] sm:$0xff] %vm587, %v586
        %589 = vst.msk [vmem:[#allocation2] sm:$0xff] %vm587, %v566
        // Predicated region
        $region60: #{rnn_decoder_forward.3} parent=50 // pred_check
          %p590 = pneg %p404
        $region61: #{rnn_decoder_forward.3} parent=50 // pred_check_branch
          %592 = sbr.rel (%p590) target = $region63
        $region62: #{rnn_decoder_forward.3} parent=50 // pred_region
          %v593 = vld [vmem:[#allocation2] sm:$0xff]
          %v594 = vld [vmem:[#allocation3] sm:$0xff]
          %v595 = vlog2.pop %v594
          %v596 = vmul.f32 %v595, 0.6931472
          %v597 = vadd.f32 %v593, %v596
          %598 = vst.msk [vmem:[%s403] sm:$0xff] %vm587, %v597
        $region63: #{rnn_decoder_forward.3} parent=50 // pred_fallthru
          _
        %s599 = sadd.s32 %s20, %s21
        %s600 = smul.u32 2, %s599
        %p601 = scmp.lt.s32.totalorder %s600, 3
        %s602 = scalar_select %p601, %s600, 3
        %s603 = smul.addr %s602, 8
        %s604 = scalar_lea.vmem %s3, %s603
        %p605 = scmp.lt.s32.totalorder %s20, 1
        %s606 = scalar_select %p605, %s20, 1
        %s607 = smul.addr %s606, 8
        %s608 = scalar_lea.vmem %s4, %s607
        // Predicated region
        $region64: #{rnn_decoder_forward.3} parent=50 // pred_check
          %p609 = pneg %p125
        $region65: #{rnn_decoder_forward.3} parent=50 // pred_check_branch
          %611 = sbr.rel (%p609) target = $region67
        $region66: #{rnn_decoder_forward.3} parent=50 // pred_region
          %s612 = sadd.s32 %s20, %s21
          %s613 = smul.u32 2, %s612
        $region67: #{rnn_decoder_forward.3} parent=50 // pred_fallthru
          _
        // Predicated region
        $region68: #{rnn_decoder_forward.3} parent=50 // pred_check
          %p614 = pneg %p151
        $region69: #{rnn_decoder_forward.3} parent=50 // pred_check_branch
          %616 = sbr.rel (%p614) target = $region71
        $region70: #{rnn_decoder_forward.3} parent=50 // pred_region
          _
        $region71: #{rnn_decoder_forward.3} parent=50 // pred_fallthru
          _
      $region51: #{rnn_decoder_forward.3} parent=5 // pred_fallthru
        _
      %p617 = scmp.le.s32.totalorder 2, %s11
      // Predicated region
      $region72: #{rnn_decoder_forward.3} parent=5 // pred_check
        %p618 = pneg %p617
      $region73: #{rnn_decoder_forward.3} parent=5 // pred_check_branch
        %620 = sbr.rel (%p618) target = $region75
      $region74: #{rnn_decoder_forward.3} parent=5 // pred_region
        %s621 = ssub.s32 %s11, 2
        // Predicated region
        $region76: #{rnn_decoder_forward.3} parent=74 // pred_check
          %p622 = pneg %p131
        $region77: #{rnn_decoder_forward.3} parent=74 // pred_check_branch
          %624 = sbr.rel (%p622) target = $region79
        $region78: #{rnn_decoder_forward.3} parent=74 // pred_region
          %s625 = sadd.s32 %s22, %s23
          %s626 = smul.u32 2, %s625
          %p627 = scmp.lt.s32.totalorder %s626, 3
          %s628 = scalar_select %p627, %s626, 3
          %s629 = smul.addr %s628, 8
          %s630 = scalar_lea.vmem %s3, %s629
        $region79: #{rnn_decoder_forward.3} parent=74 // pred_fallthru
          _
        // Predicated region
        $region80: #{rnn_decoder_forward.3} parent=74 // pred_check
          %p631 = pneg %p157
        $region81: #{rnn_decoder_forward.3} parent=74 // pred_check_branch
          %633 = sbr.rel (%p631) target = $region83
        $region82: #{rnn_decoder_forward.3} parent=74 // pred_region
          %p634 = scmp.lt.s32.totalorder %s22, 1
          %s635 = scalar_select %p634, %s22, 1
          %s636 = smul.addr %s635, 8
          %s637 = scalar_lea.vmem %s4, %s636
        $region83: #{rnn_decoder_forward.3} parent=74 // pred_fallthru
          _
      $region75: #{rnn_decoder_forward.3} parent=5 // pred_fallthru
        _
    $region6: #{rnn_decoder_forward.3} parent=1 // loop_footer
      %s15 = sadd.s32 1, %s11
    $region7: #{rnn_decoder_forward.3} parent=1 // loop_footer_branch
      %10 = sbr.rel target = $region3
    $region8: #{rnn_decoder_forward.3} parent=1 // loop_exit
      _

// kernel: rnn_decoder_forward.2
$region0: #{rnn_decoder_forward.2}
  #allocation0 [shape = 'u32[]', space=smem, size = 0x4, offset = 0x4, fixed_abs, tag = 'smem constant byte address 0x4 - core index']
  #allocation1 [shape = 'u32[144,128]{1,0:T(1,128)}', space=vmem, size = 0x12000, scoped, tag = 'internal scratch']
  %s0 = inlined_call_operand.vmem [shape: f32[8,128], index: 0, kind: input, shape index: {}]
  %s1 = inlined_call_operand.vmem [shape: f32[8,256], index: 1, kind: input, shape index: {}]
  %s2 = inlined_call_operand.hbm [shape: f32[128,768], index: 2, kind: input, shape index: {}]
  %s3 = inlined_call_operand.hbm [shape: f32[256,768], index: 3, kind: input, shape index: {}]
  %s4 = inlined_call_operand.vmem [shape: f32[1,768], index: 4, kind: input, shape index: {}]
  %s5 = inlined_call_operand.vmem [shape: f32[1,768], index: 5, kind: input, shape index: {}]
  %s6 = inlined_call_operand.vmem [shape: f32[8,256], index: 6, kind: output, shape index: {}]
  %s7 = sld [smem:[#allocation0]]
  $region42: #{rnn_decoder_forward.2} parent=0
    _
  %s9 = ssub.s32 1, %s7
  %s10 = scalar_select 0, %s9, %s7
  $region1: #{rnn_decoder_forward.2} parent=0
    #allocation2 [shape = 'u8[393216]{0}', space=vmem, size = 0x60000, scoped, tag = 'input window, operand 2, single buffered']
    #allocation3 [shape = 's32[1]{0}', space=sflag, size = 0x4, scoped, tag = 'scoped memory for rnn_decoder_forward.2']
    #allocation4 [shape = 'u8[786432]{0}', space=vmem, size = 0xc0000, scoped, tag = 'input window, operand 3, single buffered']
    #allocation5 [shape = 's32[1]{0}', space=sflag, size = 0x4, scoped, tag = 'scoped memory for rnn_decoder_forward.2']
    %11 = vsyncpa [#allocation3], 0
    %12 = vsyncpa [#allocation5], 0
    // Predicated region
    $region2: #{rnn_decoder_forward.2} parent=1 // pred_check
      _
    $region3: #{rnn_decoder_forward.2} parent=1 // pred_check_branch
      %14 = sbr.rel (0) target = $region5
    $region4: #{rnn_decoder_forward.2} parent=1 // pred_region
      _
    $region5: #{rnn_decoder_forward.2} parent=1 // pred_fallthru
      _
    // Predicated region
    $region6: #{rnn_decoder_forward.2} parent=1 // pred_check
      _
    $region7: #{rnn_decoder_forward.2} parent=1 // pred_check_branch
      %16 = sbr.rel (0) target = $region9
    $region8: #{rnn_decoder_forward.2} parent=1 // pred_region
      _
    $region9: #{rnn_decoder_forward.2} parent=1 // pred_fallthru
      _
    // Predicated region
    $region10: #{rnn_decoder_forward.2} parent=1 // pred_check
      _
    $region11: #{rnn_decoder_forward.2} parent=1 // pred_check_branch
      %18 = sbr.rel (0) target = $region13
    $region12: #{rnn_decoder_forward.2} parent=1 // pred_region
      %s20 = ssub.s32 12288, 12288
      %21 = vsyncadd [#allocation3], %s20
      %s22 = sshll.u32 [#allocation2], 4
      %s23 = int_to_ptr.vmem [resolvable:$true] %s22
      %28 = dma.hbm_to_vmem [thread:$0]  %s2, 12288, %s23, [#allocation3], 768, 768, 48
    $region13: #{rnn_decoder_forward.2} parent=1 // pred_fallthru
      _
    // Predicated region
    $region14: #{rnn_decoder_forward.2} parent=1 // pred_check
      _
    $region15: #{rnn_decoder_forward.2} parent=1 // pred_check_branch
      %30 = sbr.rel (0) target = $region17
    $region16: #{rnn_decoder_forward.2} parent=1 // pred_region
      %s32 = ssub.s32 24576, 24576
      %33 = vsyncadd [#allocation5], %s32
      %s34 = sshll.u32 [#allocation4], 4
      %s35 = int_to_ptr.vmem [resolvable:$true] %s34
      %40 = dma.hbm_to_vmem [thread:$0]  %s3, 24576, %s35, [#allocation5], 768, 768, 48
    $region17: #{rnn_decoder_forward.2} parent=1 // pred_fallthru
      _
    // Predicated region
    $region18: #{rnn_decoder_forward.2} parent=1 // pred_check
      _
    $region19: #{rnn_decoder_forward.2} parent=1 // pred_check_branch
      %42 = sbr.rel (0) target = $region21
    $region20: #{rnn_decoder_forward.2} parent=1 // pred_region
      _
    $region21: #{rnn_decoder_forward.2} parent=1 // pred_fallthru
      _
    // Predicated region
    $region22: #{rnn_decoder_forward.2} parent=1 // pred_check
      _
    $region23: #{rnn_decoder_forward.2} parent=1 // pred_check_branch
      %44 = sbr.rel (0) target = $region25
    $region24: #{rnn_decoder_forward.2} parent=1 // pred_region
      _
    $region25: #{rnn_decoder_forward.2} parent=1 // pred_fallthru
      _
    // Predicated region
    $region26: #{rnn_decoder_forward.2} parent=1 // pred_check
      _
    $region27: #{rnn_decoder_forward.2} parent=1 // pred_check_branch
      %46 = sbr.rel (0) target = $region29
    $region28: #{rnn_decoder_forward.2} parent=1 // pred_region
      %47 = dma.done [#allocation3], 12288
    $region29: #{rnn_decoder_forward.2} parent=1 // pred_fallthru
      _
    // Predicated region
    $region30: #{rnn_decoder_forward.2} parent=1 // pred_check
      _
    $region31: #{rnn_decoder_forward.2} parent=1 // pred_check_branch
      %49 = sbr.rel (0) target = $region33
    $region32: #{rnn_decoder_forward.2} parent=1 // pred_region
      %50 = dma.done [#allocation5], 24576
    $region33: #{rnn_decoder_forward.2} parent=1 // pred_fallthru
      _
    %v51 = vld [vmem:[%s0] sm:$0xff]
    %v52 = vld [vmem:[%s1] sm:$0xff]
    %v53 = vld [vmem:[%s1 + $0x8] sm:$0xff]
    %v54 = vld [vmem:[#allocation2] sm:$0xff]
    %v55 = vld [vmem:[#allocation2 + $0x8] sm:$0xff]
    %v56 = vld [vmem:[#allocation2 + $0x10] sm:$0xff]
    %v57 = vld [vmem:[#allocation2 + $0x18] sm:$0xff]
    %v58 = vld [vmem:[#allocation2 + $0x20] sm:$0xff]
    %v59 = vld [vmem:[#allocation2 + $0x28] sm:$0xff]
    %v60 = vld [vmem:[#allocation2 + $0x30] sm:$0xff]
    %v61 = vld [vmem:[#allocation2 + $0x38] sm:$0xff]
    %v62 = vld [vmem:[#allocation2 + $0x40] sm:$0xff]
    %v63 = vld [vmem:[#allocation2 + $0x48] sm:$0xff]
    %v64 = vld [vmem:[#allocation2 + $0x50] sm:$0xff]
    %v65 = vld [vmem:[#allocation2 + $0x58] sm:$0xff]
    %v66 = vld [vmem:[#allocation2 + $0x60] sm:$0xff]
    %v67 = vld [vmem:[#allocation2 + $0x68] sm:$0xff]
    %v68 = vld [vmem:[#allocation2 + $0x70] sm:$0xff]
    %v69 = vld [vmem:[#allocation2 + $0x78] sm:$0xff]
    %v70 = vld [vmem:[#allocation2 + $0x80] sm:$0xff]
    %v71 = vld [vmem:[#allocation2 + $0x88] sm:$0xff]
    %v72 = vld [vmem:[#allocation2 + $0x90] sm:$0xff]
    %v73 = vld [vmem:[#allocation2 + $0x98] sm:$0xff]
    %v74 = vld [vmem:[#allocation2 + $0xa0] sm:$0xff]
    %v75 = vld [vmem:[#allocation2 + $0xa8] sm:$0xff]
    %v76 = vld [vmem:[#allocation2 + $0xb0] sm:$0xff]
    %v77 = vld [vmem:[#allocation2 + $0xb8] sm:$0xff]
    %v78 = vld [vmem:[#allocation2 + $0xc0] sm:$0xff]
    %v79 = vld [vmem:[#allocation2 + $0xc8] sm:$0xff]
    %v80 = vld [vmem:[#allocation2 + $0xd0] sm:$0xff]
    %v81 = vld [vmem:[#allocation2 + $0xd8] sm:$0xff]
    %v82 = vld [vmem:[#allocation2 + $0xe0] sm:$0xff]
    %v83 = vld [vmem:[#allocation2 + $0xe8] sm:$0xff]
    %v84 = vld [vmem:[#allocation2 + $0xf0] sm:$0xff]
    %v85 = vld [vmem:[#allocation2 + $0xf8] sm:$0xff]
    %v86 = vld [vmem:[#allocation2 + $0x100] sm:$0xff]
    %v87 = vld [vmem:[#allocation2 + $0x108] sm:$0xff]
    %v88 = vld [vmem:[#allocation2 + $0x110] sm:$0xff]
    %v89 = vld [vmem:[#allocation2 + $0x118] sm:$0xff]
    %v90 = vld [vmem:[#allocation2 + $0x120] sm:$0xff]
    %v91 = vld [vmem:[#allocation2 + $0x128] sm:$0xff]
    %v92 = vld [vmem:[#allocation2 + $0x130] sm:$0xff]
    %v93 = vld [vmem:[#allocation2 + $0x138] sm:$0xff]
    %v94 = vld [vmem:[#allocation2 + $0x140] sm:$0xff]
    %v95 = vld [vmem:[#allocation2 + $0x148] sm:$0xff]
    %v96 = vld [vmem:[#allocation2 + $0x150] sm:$0xff]
    %v97 = vld [vmem:[#allocation2 + $0x158] sm:$0xff]
    %v98 = vld [vmem:[#allocation2 + $0x160] sm:$0xff]
    %v99 = vld [vmem:[#allocation2 + $0x168] sm:$0xff]
    %v100 = vld [vmem:[#allocation2 + $0x170] sm:$0xff]
    %v101 = vld [vmem:[#allocation2 + $0x178] sm:$0xff]
    %v102 = vld [vmem:[#allocation2 + $0x180] sm:$0xff]
    %v103 = vld [vmem:[#allocation2 + $0x188] sm:$0xff]
    %v104 = vld [vmem:[#allocation2 + $0x190] sm:$0xff]
    %v105 = vld [vmem:[#allocation2 + $0x198] sm:$0xff]
    %v106 = vld [vmem:[#allocation2 + $0x1a0] sm:$0xff]
    %v107 = vld [vmem:[#allocation2 + $0x1a8] sm:$0xff]
    %v108 = vld [vmem:[#allocation2 + $0x1b0] sm:$0xff]
    %v109 = vld [vmem:[#allocation2 + $0x1b8] sm:$0xff]
    %v110 = vld [vmem:[#allocation2 + $0x1c0] sm:$0xff]
    %v111 = vld [vmem:[#allocation2 + $0x1c8] sm:$0xff]
    %v112 = vld [vmem:[#allocation2 + $0x1d0] sm:$0xff]
    %v113 = vld [vmem:[#allocation2 + $0x1d8] sm:$0xff]
    %v114 = vld [vmem:[#allocation2 + $0x1e0] sm:$0xff]
    %v115 = vld [vmem:[#allocation2 + $0x1e8] sm:$0xff]
    %v116 = vld [vmem:[#allocation2 + $0x1f0] sm:$0xff]
    %v117 = vld [vmem:[#allocation2 + $0x1f8] sm:$0xff]
    %v118 = vld [vmem:[#allocation2 + $0x200] sm:$0xff]
    %v119 = vld [vmem:[#allocation2 + $0x208] sm:$0xff]
    %v120 = vld [vmem:[#allocation2 + $0x210] sm:$0xff]
    %v121 = vld [vmem:[#allocation2 + $0x218] sm:$0xff]
    %v122 = vld [vmem:[#allocation2 + $0x220] sm:$0xff]
    %v123 = vld [vmem:[#allocation2 + $0x228] sm:$0xff]
    %v124 = vld [vmem:[#allocation2 + $0x230] sm:$0xff]
    %v125 = vld [vmem:[#allocation2 + $0x238] sm:$0xff]
    %v126 = vld [vmem:[#allocation2 + $0x240] sm:$0xff]
    %v127 = vld [vmem:[#allocation2 + $0x248] sm:$0xff]
    %v128 = vld [vmem:[#allocation2 + $0x250] sm:$0xff]
    %v129 = vld [vmem:[#allocation2 + $0x258] sm:$0xff]
    %v130 = vld [vmem:[#allocation2 + $0x260] sm:$0xff]
    %v131 = vld [vmem:[#allocation2 + $0x268] sm:$0xff]
    %v132 = vld [vmem:[#allocation2 + $0x270] sm:$0xff]
    %v133 = vld [vmem:[#allocation2 + $0x278] sm:$0xff]
    %v134 = vld [vmem:[#allocation2 + $0x280] sm:$0xff]
    %v135 = vld [vmem:[#allocation2 + $0x288] sm:$0xff]
    %v136 = vld [vmem:[#allocation2 + $0x290] sm:$0xff]
    %v137 = vld [vmem:[#allocation2 + $0x298] sm:$0xff]
    %v138 = vld [vmem:[#allocation2 + $0x2a0] sm:$0xff]
    %v139 = vld [vmem:[#allocation2 + $0x2a8] sm:$0xff]
    %v140 = vld [vmem:[#allocation2 + $0x2b0] sm:$0xff]
    %v141 = vld [vmem:[#allocation2 + $0x2b8] sm:$0xff]
    %v142 = vld [vmem:[#allocation2 + $0x2c0] sm:$0xff]
    %v143 = vld [vmem:[#allocation2 + $0x2c8] sm:$0xff]
    %v144 = vld [vmem:[#allocation2 + $0x2d0] sm:$0xff]
    %v145 = vld [vmem:[#allocation2 + $0x2d8] sm:$0xff]
    %v146 = vld [vmem:[#allocation2 + $0x2e0] sm:$0xff]
    %v147 = vld [vmem:[#allocation2 + $0x2e8] sm:$0xff]
    %v148 = vld [vmem:[#allocation2 + $0x2f0] sm:$0xff]
    %v149 = vld [vmem:[#allocation2 + $0x2f8] sm:$0xff]
    %v150 = vld [vmem:[%s4] sm:$0x3f]
    %v152 = vlaneseq
    %v153 = vshrl.u32 %v152, 7
    %v154 = vsub.s32 0, %v153
    %v155 = vrot.slane %v150, %v154
    %v156 = vlaneseq
    %v157 = vshrl.u32 %v156, 7
    %v158 = vsub.s32 1, %v157
    %v159 = vrot.slane %v150, %v158
    %v160 = vlaneseq
    %v161 = vshrl.u32 %v160, 7
    %v162 = vsub.s32 2, %v161
    %v163 = vrot.slane %v150, %v162
    %v164 = vlaneseq
    %v165 = vshrl.u32 %v164, 7
    %v166 = vsub.s32 3, %v165
    %v167 = vrot.slane %v150, %v166
    %v168 = vlaneseq
    %v169 = vshrl.u32 %v168, 7
    %v170 = vsub.s32 4, %v169
    %v171 = vrot.slane %v150, %v170
    %v172 = vlaneseq
    %v173 = vshrl.u32 %v172, 7
    %v174 = vsub.s32 5, %v173
    %v175 = vrot.slane %v150, %v174
    %182 = vmatprep.subr.mxu0 %v145
    %183 = vmatpush1.msra.mxu0 %v144
    %184 = vmatprep.subr.mxu0 %v139
    %185 = vmatpush1.msra.mxu0 %v138
    %186 = vmatprep.subr.mxu0 %v133
    %187 = vmatpush1.msra.mxu0 %v132
    %188 = vmatprep.subr.mxu0 %v127
    %189 = vmatpush1.msra.mxu0 %v126
    %190 = vmatprep.subr.mxu0 %v121
    %191 = vmatpush1.msra.mxu0 %v120
    %192 = vmatprep.subr.mxu0 %v115
    %193 = vmatpush1.msra.mxu0 %v114
    %194 = vmatprep.subr.mxu0 %v109
    %195 = vmatpush1.msra.mxu0 %v108
    %196 = vmatprep.subr.mxu0 %v103
    %197 = vmatpush1.msra.mxu0 %v102
    %198 = vmatprep.subr.mxu0 %v97
    %199 = vmatpush1.msra.mxu0 %v96
    %200 = vmatprep.subr.mxu0 %v91
    %201 = vmatpush1.msra.mxu0 %v90
    %202 = vmatprep.subr.mxu0 %v85
    %203 = vmatpush1.msra.mxu0 %v84
    %204 = vmatprep.subr.mxu0 %v79
    %205 = vmatpush1.msra.mxu0 %v78
    %206 = vmatprep.subr.mxu0 %v73
    %207 = vmatpush1.msra.mxu0 %v72
    %208 = vmatprep.subr.mxu0 %v67
    %209 = vmatpush1.msra.mxu0 %v66
    %210 = vmatprep.subr.mxu0 %v61
    %211 = vmatpush1.msra.mxu0 %v60
    %212 = vmatprep.subr.mxu0 %v55
    %213 = vmatpush1.msra.mxu0 %v54
    %214 = vmatprep.subr.mxu0 0.0
    %215 = vmatpush2.msra.mxu0 0.0
    %216 = vmatprep.subr.mxu0 0.0
    %217 = vmatpush2.msra.mxu0 0.0
    %218 = vmatprep.subr.mxu0 0.0
    %219 = vmatpush2.msra.mxu0 0.0
    %220 = vmatprep.subr.mxu0 0.0
    %221 = vmatpush2.msra.mxu0 0.0
    %222 = vmatprep.subr.mxu0 0.0
    %223 = vmatpush2.msra.mxu0 0.0
    %224 = vmatprep.subr.mxu0 0.0
    %225 = vmatpush2.msra.mxu0 0.0
    %226 = vmatprep.subr.mxu0 0.0
    %227 = vmatpush2.msra.mxu0 0.0
    %228 = vmatprep.subr.mxu0 0.0
    %229 = vmatpush2.msra.mxu0 0.0
    %230 = vmatprep.subr.mxu0 0.0
    %231 = vmatpush2.msra.mxu0 0.0
    %232 = vmatprep.subr.mxu0 0.0
    %233 = vmatpush2.msra.mxu0 0.0
    %234 = vmatprep.subr.mxu0 0.0
    %235 = vmatpush2.msra.mxu0 0.0
    %236 = vmatprep.subr.mxu0 0.0
    %237 = vmatpush2.msra.mxu0 0.0
    %238 = vmatprep.subr.mxu0 0.0
    %239 = vmatpush2.msra.mxu0 0.0
    %240 = vmatprep.subr.mxu0 0.0
    %241 = vmatpush2.msra.mxu0 0.0
    %242 = vmatprep.subr.mxu0 0.0
    %243 = vmatpush2.msra.mxu0 0.0
    %244 = vmatprep.subr.mxu0 0.0
    %245 = vmatpush2.msra.mxu0 0.0
    %246 = vmatprep.mubr.f32.mxu0 0.0
    %247 = vmatmul.mubr.f32.gmra.mxu0 %v51
    %v248 = vpop.f32.mrf.mxu0
    %v249 = vadd.f32 %v155, %v248
    %v250 = vpop.f32.mrf.mxu0
    %v251 = vadd.f32 %v159, %v250
    %252 = vdwg.mxu0
    %253 = vmatprep.subr.mxu0 %v147
    %254 = vmatpush1.msra.mxu0 %v146
    %255 = vmatprep.subr.mxu0 %v141
    %256 = vmatpush1.msra.mxu0 %v140
    %257 = vmatprep.subr.mxu0 %v135
    %258 = vmatpush1.msra.mxu0 %v134
    %259 = vmatprep.subr.mxu0 %v129
    %260 = vmatpush1.msra.mxu0 %v128
    %261 = vmatprep.subr.mxu0 %v123
    %262 = vmatpush1.msra.mxu0 %v122
    %263 = vmatprep.subr.mxu0 %v117
    %264 = vmatpush1.msra.mxu0 %v116
    %265 = vmatprep.subr.mxu0 %v111
    %266 = vmatpush1.msra.mxu0 %v110
    %267 = vmatprep.subr.mxu0 %v105
    %268 = vmatpush1.msra.mxu0 %v104
    %269 = vmatprep.subr.mxu0 %v99
    %270 = vmatpush1.msra.mxu0 %v98
    %271 = vmatprep.subr.mxu0 %v93
    %272 = vmatpush1.msra.mxu0 %v92
    %273 = vmatprep.subr.mxu0 %v87
    %274 = vmatpush1.msra.mxu0 %v86
    %275 = vmatprep.subr.mxu0 %v81
    %276 = vmatpush1.msra.mxu0 %v80
    %277 = vmatprep.subr.mxu0 %v75
    %278 = vmatpush1.msra.mxu0 %v74
    %279 = vmatprep.subr.mxu0 %v69
    %280 = vmatpush1.msra.mxu0 %v68
    %281 = vmatprep.subr.mxu0 %v63
    %282 = vmatpush1.msra.mxu0 %v62
    %283 = vmatprep.subr.mxu0 %v57
    %284 = vmatpush1.msra.mxu0 %v56
    %285 = vmatprep.subr.mxu0 0.0
    %286 = vmatpush2.msra.mxu0 0.0
    %287 = vmatprep.subr.mxu0 0.0
    %288 = vmatpush2.msra.mxu0 0.0
    %289 = vmatprep.subr.mxu0 0.0
    %290 = vmatpush2.msra.mxu0 0.0
    %291 = vmatprep.subr.mxu0 0.0
    %292 = vmatpush2.msra.mxu0 0.0
    %293 = vmatprep.subr.mxu0 0.0
    %294 = vmatpush2.msra.mxu0 0.0
    %295 = vmatprep.subr.mxu0 0.0
    %296 = vmatpush2.msra.mxu0 0.0
    %297 = vmatprep.subr.mxu0 0.0
    %298 = vmatpush2.msra.mxu0 0.0
    %299 = vmatprep.subr.mxu0 0.0
    %300 = vmatpush2.msra.mxu0 0.0
    %301 = vmatprep.subr.mxu0 0.0
    %302 = vmatpush2.msra.mxu0 0.0
    %303 = vmatprep.subr.mxu0 0.0
    %304 = vmatpush2.msra.mxu0 0.0
    %305 = vmatprep.subr.mxu0 0.0
    %306 = vmatpush2.msra.mxu0 0.0
    %307 = vmatprep.subr.mxu0 0.0
    %308 = vmatpush2.msra.mxu0 0.0
    %309 = vmatprep.subr.mxu0 0.0
    %310 = vmatpush2.msra.mxu0 0.0
    %311 = vmatprep.subr.mxu0 0.0
    %312 = vmatpush2.msra.mxu0 0.0
    %313 = vmatprep.subr.mxu0 0.0
    %314 = vmatpush2.msra.mxu0 0.0
    %315 = vmatprep.subr.mxu0 0.0
    %316 = vmatpush2.msra.mxu0 0.0
    %317 = vmatprep.mubr.f32.mxu0 0.0
    %318 = vmatmul.mubr.f32.gmra.mxu0 %v51
    %v319 = vpop.f32.mrf.mxu0
    %v320 = vadd.f32 %v163, %v319
    %v321 = vpop.f32.mrf.mxu0
    %v322 = vadd.f32 %v167, %v321
    %323 = vdwg.mxu0
    %324 = vmatprep.subr.mxu0 %v149
    %325 = vmatpush1.msra.mxu0 %v148
    %326 = vmatprep.subr.mxu0 %v143
    %327 = vmatpush1.msra.mxu0 %v142
    %328 = vmatprep.subr.mxu0 %v137
    %329 = vmatpush1.msra.mxu0 %v136
    %330 = vmatprep.subr.mxu0 %v131
    %331 = vmatpush1.msra.mxu0 %v130
    %332 = vmatprep.subr.mxu0 %v125
    %333 = vmatpush1.msra.mxu0 %v124
    %334 = vmatprep.subr.mxu0 %v119
    %335 = vmatpush1.msra.mxu0 %v118
    %336 = vmatprep.subr.mxu0 %v113
    %337 = vmatpush1.msra.mxu0 %v112
    %338 = vmatprep.subr.mxu0 %v107
    %339 = vmatpush1.msra.mxu0 %v106
    %340 = vmatprep.subr.mxu0 %v101
    %341 = vmatpush1.msra.mxu0 %v100
    %342 = vmatprep.subr.mxu0 %v95
    %343 = vmatpush1.msra.mxu0 %v94
    %344 = vmatprep.subr.mxu0 %v89
    %345 = vmatpush1.msra.mxu0 %v88
    %346 = vmatprep.subr.mxu0 %v83
    %347 = vmatpush1.msra.mxu0 %v82
    %348 = vmatprep.subr.mxu0 %v77
    %349 = vmatpush1.msra.mxu0 %v76
    %350 = vmatprep.subr.mxu0 %v71
    %351 = vmatpush1.msra.mxu0 %v70
    %352 = vmatprep.subr.mxu0 %v65
    %353 = vmatpush1.msra.mxu0 %v64
    %354 = vmatprep.subr.mxu0 %v59
    %355 = vmatpush1.msra.mxu0 %v58
    %356 = vmatprep.subr.mxu0 0.0
    %357 = vmatpush2.msra.mxu0 0.0
    %358 = vmatprep.subr.mxu0 0.0
    %359 = vmatpush2.msra.mxu0 0.0
    %360 = vmatprep.subr.mxu0 0.0
    %361 = vmatpush2.msra.mxu0 0.0
    %362 = vmatprep.subr.mxu0 0.0
    %363 = vmatpush2.msra.mxu0 0.0
    %364 = vmatprep.subr.mxu0 0.0
    %365 = vmatpush2.msra.mxu0 0.0
    %366 = vmatprep.subr.mxu0 0.0
    %367 = vmatpush2.msra.mxu0 0.0
    %368 = vmatprep.subr.mxu0 0.0
    %369 = vmatpush2.msra.mxu0 0.0
    %370 = vmatprep.subr.mxu0 0.0
    %371 = vmatpush2.msra.mxu0 0.0
    %372 = vmatprep.subr.mxu0 0.0
    %373 = vmatpush2.msra.mxu0 0.0
    %374 = vmatprep.subr.mxu0 0.0
    %375 = vmatpush2.msra.mxu0 0.0
    %376 = vmatprep.subr.mxu0 0.0
    %377 = vmatpush2.msra.mxu0 0.0
    %378 = vmatprep.subr.mxu0 0.0
    %379 = vmatpush2.msra.mxu0 0.0
    %380 = vmatprep.subr.mxu0 0.0
    %381 = vmatpush2.msra.mxu0 0.0
    %382 = vmatprep.subr.mxu0 0.0
    %383 = vmatpush2.msra.mxu0 0.0
    %384 = vmatprep.subr.mxu0 0.0
    %385 = vmatpush2.msra.mxu0 0.0
    %386 = vmatprep.subr.mxu0 0.0
    %387 = vmatpush2.msra.mxu0 0.0
    %388 = vmatprep.mubr.f32.mxu0 0.0
    %389 = vmatmul.mubr.f32.gmra.mxu0 %v51
    %v390 = vpop.f32.mrf.mxu0
    %v391 = vadd.f32 %v171, %v390
    %v392 = vpop.f32.mrf.mxu0
    %v393 = vadd.f32 %v175, %v392
    %394 = vdwg.mxu0
    %v395 = vld [vmem:[#allocation4] sm:$0xff]
    %v396 = vld [vmem:[#allocation4 + $0x8] sm:$0xff]
    %v397 = vld [vmem:[#allocation4 + $0x10] sm:$0xff]
    %v398 = vld [vmem:[#allocation4 + $0x18] sm:$0xff]
    %v399 = vld [vmem:[#allocation4 + $0x20] sm:$0xff]
    %v400 = vld [vmem:[#allocation4 + $0x28] sm:$0xff]
    %v401 = vld [vmem:[#allocation4 + $0x30] sm:$0xff]
    %v402 = vld [vmem:[#allocation4 + $0x38] sm:$0xff]
    %v403 = vld [vmem:[#allocation4 + $0x40] sm:$0xff]
    %v404 = vld [vmem:[#allocation4 + $0x48] sm:$0xff]
    %v405 = vld [vmem:[#allocation4 + $0x50] sm:$0xff]
    %v406 = vld [vmem:[#allocation4 + $0x58] sm:$0xff]
    %v407 = vld [vmem:[#allocation4 + $0x60] sm:$0xff]
    %v408 = vld [vmem:[#allocation4 + $0x68] sm:$0xff]
    %v409 = vld [vmem:[#allocation4 + $0x70] sm:$0xff]
    %v410 = vld [vmem:[#allocation4 + $0x78] sm:$0xff]
    %v411 = vld [vmem:[#allocation4 + $0x80] sm:$0xff]
    %v412 = vld [vmem:[#allocation4 + $0x88] sm:$0xff]
    %v413 = vld [vmem:[#allocation4 + $0x90] sm:$0xff]
    %v414 = vld [vmem:[#allocation4 + $0x98] sm:$0xff]
    %v415 = vld [vmem:[#allocation4 + $0xa0] sm:$0xff]
    %v416 = vld [vmem:[#allocation4 + $0xa8] sm:$0xff]
    %v417 = vld [vmem:[#allocation4 + $0xb0] sm:$0xff]
    %v418 = vld [vmem:[#allocation4 + $0xb8] sm:$0xff]
    %v419 = vld [vmem:[#allocation4 + $0xc0] sm:$0xff]
    %v420 = vld [vmem:[#allocation4 + $0xc8] sm:$0xff]
    %v421 = vld [vmem:[#allocation4 + $0xd0] sm:$0xff]
    %v422 = vld [vmem:[#allocation4 + $0xd8] sm:$0xff]
    %v423 = vld [vmem:[#allocation4 + $0xe0] sm:$0xff]
    %v424 = vld [vmem:[#allocation4 + $0xe8] sm:$0xff]
    %v425 = vld [vmem:[#allocation4 + $0xf0] sm:$0xff]
    %v426 = vld [vmem:[#allocation4 + $0xf8] sm:$0xff]
    %v427 = vld [vmem:[#allocation4 + $0x100] sm:$0xff]
    %v428 = vld [vmem:[#allocation4 + $0x108] sm:$0xff]
    %v429 = vld [vmem:[#allocation4 + $0x110] sm:$0xff]
    %v430 = vld [vmem:[#allocation4 + $0x118] sm:$0xff]
    %v431 = vld [vmem:[#allocation4 + $0x120] sm:$0xff]
    %v432 = vld [vmem:[#allocation4 + $0x128] sm:$0xff]
    %v433 = vld [vmem:[#allocation4 + $0x130] sm:$0xff]
    %v434 = vld [vmem:[#allocation4 + $0x138] sm:$0xff]
    %v435 = vld [vmem:[#allocation4 + $0x140] sm:$0xff]
    %v436 = vld [vmem:[#allocation4 + $0x148] sm:$0xff]
    %v437 = vld [vmem:[#allocation4 + $0x150] sm:$0xff]
    %v438 = vld [vmem:[#allocation4 + $0x158] sm:$0xff]
    %v439 = vld [vmem:[#allocation4 + $0x160] sm:$0xff]
    %v440 = vld [vmem:[#allocation4 + $0x168] sm:$0xff]
    %v441 = vld [vmem:[#allocation4 + $0x170] sm:$0xff]
    %v442 = vld [vmem:[#allocation4 + $0x178] sm:$0xff]
    %v443 = vld [vmem:[#allocation4 + $0x180] sm:$0xff]
    %v444 = vld [vmem:[#allocation4 + $0x188] sm:$0xff]
    %v445 = vld [vmem:[#allocation4 + $0x190] sm:$0xff]
    %v446 = vld [vmem:[#allocation4 + $0x198] sm:$0xff]
    %v447 = vld [vmem:[#allocation4 + $0x1a0] sm:$0xff]
    %v448 = vld [vmem:[#allocation4 + $0x1a8] sm:$0xff]
    %v449 = vld [vmem:[#allocation4 + $0x1b0] sm:$0xff]
    %v450 = vld [vmem:[#allocation4 + $0x1b8] sm:$0xff]
    %v451 = vld [vmem:[#allocation4 + $0x1c0] sm:$0xff]
    %v452 = vld [vmem:[#allocation4 + $0x1c8] sm:$0xff]
    %v453 = vld [vmem:[#allocation4 + $0x1d0] sm:$0xff]
    %v454 = vld [vmem:[#allocation4 + $0x1d8] sm:$0xff]
    %v455 = vld [vmem:[#allocation4 + $0x1e0] sm:$0xff]
    %v456 = vld [vmem:[#allocation4 + $0x1e8] sm:$0xff]
    %v457 = vld [vmem:[#allocation4 + $0x1f0] sm:$0xff]
    %v458 = vld [vmem:[#allocation4 + $0x1f8] sm:$0xff]
    %v459 = vld [vmem:[#allocation4 + $0x200] sm:$0xff]
    %v460 = vld [vmem:[#allocation4 + $0x208] sm:$0xff]
    %v461 = vld [vmem:[#allocation4 + $0x210] sm:$0xff]
    %v462 = vld [vmem:[#allocation4 + $0x218] sm:$0xff]
    %v463 = vld [vmem:[#allocation4 + $0x220] sm:$0xff]
    %v464 = vld [vmem:[#allocation4 + $0x228] sm:$0xff]
    %v465 = vld [vmem:[#allocation4 + $0x230] sm:$0xff]
    %v466 = vld [vmem:[#allocation4 + $0x238] sm:$0xff]
    %v467 = vld [vmem:[#allocation4 + $0x240] sm:$0xff]
    %v468 = vld [vmem:[#allocation4 + $0x248] sm:$0xff]
    %v469 = vld [vmem:[#allocation4 + $0x250] sm:$0xff]
    %v470 = vld [vmem:[#allocation4 + $0x258] sm:$0xff]
    %v471 = vld [vmem:[#allocation4 + $0x260] sm:$0xff]
    %v472 = vld [vmem:[#allocation4 + $0x268] sm:$0xff]
    %v473 = vld [vmem:[#allocation4 + $0x270] sm:$0xff]
    %v474 = vld [vmem:[#allocation4 + $0x278] sm:$0xff]
    %v475 = vld [vmem:[#allocation4 + $0x280] sm:$0xff]
    %v476 = vld [vmem:[#allocation4 + $0x288] sm:$0xff]
    %v477 = vld [vmem:[#allocation4 + $0x290] sm:$0xff]
    %v478 = vld [vmem:[#allocation4 + $0x298] sm:$0xff]
    %v479 = vld [vmem:[#allocation4 + $0x2a0] sm:$0xff]
    %v480 = vld [vmem:[#allocation4 + $0x2a8] sm:$0xff]
    %v481 = vld [vmem:[#allocation4 + $0x2b0] sm:$0xff]
    %v482 = vld [vmem:[#allocation4 + $0x2b8] sm:$0xff]
    %v483 = vld [vmem:[#allocation4 + $0x2c0] sm:$0xff]
    %v484 = vld [vmem:[#allocation4 + $0x2c8] sm:$0xff]
    %v485 = vld [vmem:[#allocation4 + $0x2d0] sm:$0xff]
    %v486 = vld [vmem:[#allocation4 + $0x2d8] sm:$0xff]
    %v487 = vld [vmem:[#allocation4 + $0x2e0] sm:$0xff]
    %v488 = vld [vmem:[#allocation4 + $0x2e8] sm:$0xff]
    %v489 = vld [vmem:[#allocation4 + $0x2f0] sm:$0xff]
    %v490 = vld [vmem:[#allocation4 + $0x2f8] sm:$0xff]
    %v491 = vld [vmem:[#allocation4 + $0x300] sm:$0xff]
    %v492 = vld [vmem:[#allocation4 + $0x308] sm:$0xff]
    %v493 = vld [vmem:[#allocation4 + $0x310] sm:$0xff]
    %v494 = vld [vmem:[#allocation4 + $0x318] sm:$0xff]
    %v495 = vld [vmem:[#allocation4 + $0x320] sm:$0xff]
    %v496 = vld [vmem:[#allocation4 + $0x328] sm:$0xff]
    %v497 = vld [vmem:[#allocation4 + $0x330] sm:$0xff]
    %v498 = vld [vmem:[#allocation4 + $0x338] sm:$0xff]
    %v499 = vld [vmem:[#allocation4 + $0x340] sm:$0xff]
    %v500 = vld [vmem:[#allocation4 + $0x348] sm:$0xff]
    %v501 = vld [vmem:[#allocation4 + $0x350] sm:$0xff]
    %v502 = vld [vmem:[#allocation4 + $0x358] sm:$0xff]
    %v503 = vld [vmem:[#allocation4 + $0x360] sm:$0xff]
    %v504 = vld [vmem:[#allocation4 + $0x368] sm:$0xff]
    %v505 = vld [vmem:[#allocation4 + $0x370] sm:$0xff]
    %v506 = vld [vmem:[#allocation4 + $0x378] sm:$0xff]
    %v507 = vld [vmem:[#allocation4 + $0x380] sm:$0xff]
    %v508 = vld [vmem:[#allocation4 + $0x388] sm:$0xff]
    %v509 = vld [vmem:[#allocation4 + $0x390] sm:$0xff]
    %v510 = vld [vmem:[#allocation4 + $0x398] sm:$0xff]
    %v511 = vld [vmem:[#allocation4 + $0x3a0] sm:$0xff]
    %v512 = vld [vmem:[#allocation4 + $0x3a8] sm:$0xff]
    %v513 = vld [vmem:[#allocation4 + $0x3b0] sm:$0xff]
    %v514 = vld [vmem:[#allocation4 + $0x3b8] sm:$0xff]
    %v515 = vld [vmem:[#allocation4 + $0x3c0] sm:$0xff]
    %v516 = vld [vmem:[#allocation4 + $0x3c8] sm:$0xff]
    %v517 = vld [vmem:[#allocation4 + $0x3d0] sm:$0xff]
    %v518 = vld [vmem:[#allocation4 + $0x3d8] sm:$0xff]
    %v519 = vld [vmem:[#allocation4 + $0x3e0] sm:$0xff]
    %v520 = vld [vmem:[#allocation4 + $0x3e8] sm:$0xff]
    %v521 = vld [vmem:[#allocation4 + $0x3f0] sm:$0xff]
    %v522 = vld [vmem:[#allocation4 + $0x3f8] sm:$0xff]
    %v523 = vld [vmem:[#allocation4 + $0x400] sm:$0xff]
    %v524 = vld [vmem:[#allocation4 + $0x408] sm:$0xff]
    %v525 = vld [vmem:[#allocation4 + $0x410] sm:$0xff]
    %v526 = vld [vmem:[#allocation4 + $0x418] sm:$0xff]
    %v527 = vld [vmem:[#allocation4 + $0x420] sm:$0xff]
    %v528 = vld [vmem:[#allocation4 + $0x428] sm:$0xff]
    %v529 = vld [vmem:[#allocation4 + $0x430] sm:$0xff]
    %v530 = vld [vmem:[#allocation4 + $0x438] sm:$0xff]
    %v531 = vld [vmem:[#allocation4 + $0x440] sm:$0xff]
    %v532 = vld [vmem:[#allocation4 + $0x448] sm:$0xff]
    %v533 = vld [vmem:[#allocation4 + $0x450] sm:$0xff]
    %v534 = vld [vmem:[#allocation4 + $0x458] sm:$0xff]
    %v535 = vld [vmem:[#allocation4 + $0x460] sm:$0xff]
    %v536 = vld [vmem:[#allocation4 + $0x468] sm:$0xff]
    %v537 = vld [vmem:[#allocation4 + $0x470] sm:$0xff]
    %v538 = vld [vmem:[#allocation4 + $0x478] sm:$0xff]
    %v539 = vld [vmem:[#allocation4 + $0x480] sm:$0xff]
    %v540 = vld [vmem:[#allocation4 + $0x488] sm:$0xff]
    %v541 = vld [vmem:[#allocation4 + $0x490] sm:$0xff]
    %v542 = vld [vmem:[#allocation4 + $0x498] sm:$0xff]
    %v543 = vld [vmem:[#allocation4 + $0x4a0] sm:$0xff]
    %v544 = vld [vmem:[#allocation4 + $0x4a8] sm:$0xff]
    %v545 = vld [vmem:[#allocation4 + $0x4b0] sm:$0xff]
    %v546 = vld [vmem:[#allocation4 + $0x4b8] sm:$0xff]
    %v547 = vld [vmem:[#allocation4 + $0x4c0] sm:$0xff]
    %v548 = vld [vmem:[#allocation4 + $0x4c8] sm:$0xff]
    %v549 = vld [vmem:[#allocation4 + $0x4d0] sm:$0xff]
    %v550 = vld [vmem:[#allocation4 + $0x4d8] sm:$0xff]
    %v551 = vld [vmem:[#allocation4 + $0x4e0] sm:$0xff]
    %v552 = vld [vmem:[#allocation4 + $0x4e8] sm:$0xff]
    %v553 = vld [vmem:[#allocation4 + $0x4f0] sm:$0xff]
    %v554 = vld [vmem:[#allocation4 + $0x4f8] sm:$0xff]
    %v555 = vld [vmem:[#allocation4 + $0x500] sm:$0xff]
    %v556 = vld [vmem:[#allocation4 + $0x508] sm:$0xff]
    %v557 = vld [vmem:[#allocation4 + $0x510] sm:$0xff]
    %v558 = vld [vmem:[#allocation4 + $0x518] sm:$0xff]
    %v559 = vld [vmem:[#allocation4 + $0x520] sm:$0xff]
    %v560 = vld [vmem:[#allocation4 + $0x528] sm:$0xff]
    %v561 = vld [vmem:[#allocation4 + $0x530] sm:$0xff]
    %v562 = vld [vmem:[#allocation4 + $0x538] sm:$0xff]
    %v563 = vld [vmem:[#allocation4 + $0x540] sm:$0xff]
    %v564 = vld [vmem:[#allocation4 + $0x548] sm:$0xff]
    %v565 = vld [vmem:[#allocation4 + $0x550] sm:$0xff]
    %v566 = vld [vmem:[#allocation4 + $0x558] sm:$0xff]
    %v567 = vld [vmem:[#allocation4 + $0x560] sm:$0xff]
    %v568 = vld [vmem:[#allocation4 + $0x568] sm:$0xff]
    %v569 = vld [vmem:[#allocation4 + $0x570] sm:$0xff]
    %v570 = vld [vmem:[#allocation4 + $0x578] sm:$0xff]
    %v571 = vld [vmem:[#allocation4 + $0x580] sm:$0xff]
    %v572 = vld [vmem:[#allocation4 + $0x588] sm:$0xff]
    %v573 = vld [vmem:[#allocation4 + $0x590] sm:$0xff]
    %v574 = vld [vmem:[#allocation4 + $0x598] sm:$0xff]
    %v575 = vld [vmem:[#allocation4 + $0x5a0] sm:$0xff]
    %v576 = vld [vmem:[#allocation4 + $0x5a8] sm:$0xff]
    %v577 = vld [vmem:[#allocation4 + $0x5b0] sm:$0xff]
    %v578 = vld [vmem:[#allocation4 + $0x5b8] sm:$0xff]
    %v579 = vld [vmem:[#allocation4 + $0x5c0] sm:$0xff]
    %v580 = vld [vmem:[#allocation4 + $0x5c8] sm:$0xff]
    %v581 = vld [vmem:[#allocation4 + $0x5d0] sm:$0xff]
    %v582 = vld [vmem:[#allocation4 + $0x5d8] sm:$0xff]
    %v583 = vld [vmem:[#allocation4 + $0x5e0] sm:$0xff]
    %v584 = vld [vmem:[#allocation4 + $0x5e8] sm:$0xff]
    %v585 = vld [vmem:[#allocation4 + $0x5f0] sm:$0xff]
    %v586 = vld [vmem:[#allocation4 + $0x5f8] sm:$0xff]
    %v587 = vld [vmem:[%s5] sm:$0x3f]
    %v589 = vlaneseq
    %v590 = vshrl.u32 %v589, 7
    %v591 = vsub.s32 0, %v590
    %v592 = vrot.slane %v587, %v591
    %v593 = vlaneseq
    %v594 = vshrl.u32 %v593, 7
    %v595 = vsub.s32 1, %v594
    %v596 = vrot.slane %v587, %v595
    %v597 = vlaneseq
    %v598 = vshrl.u32 %v597, 7
    %v599 = vsub.s32 2, %v598
    %v600 = vrot.slane %v587, %v599
    %v601 = vlaneseq
    %v602 = vshrl.u32 %v601, 7
    %v603 = vsub.s32 3, %v602
    %v604 = vrot.slane %v587, %v603
    %v605 = vlaneseq
    %v606 = vshrl.u32 %v605, 7
    %v607 = vsub.s32 4, %v606
    %v608 = vrot.slane %v587, %v607
    %v609 = vlaneseq
    %v610 = vshrl.u32 %v609, 7
    %v611 = vsub.s32 5, %v610
    %v612 = vrot.slane %v587, %v611
    %619 = vmatprep.subr.mxu0 %v486
    %620 = vmatpush1.msra.mxu0 %v485
    %621 = vmatprep.subr.mxu0 %v480
    %622 = vmatpush1.msra.mxu0 %v479
    %623 = vmatprep.subr.mxu0 %v474
    %624 = vmatpush1.msra.mxu0 %v473
    %625 = vmatprep.subr.mxu0 %v468
    %626 = vmatpush1.msra.mxu0 %v467
    %627 = vmatprep.subr.mxu0 %v462
    %628 = vmatpush1.msra.mxu0 %v461
    %629 = vmatprep.subr.mxu0 %v456
    %630 = vmatpush1.msra.mxu0 %v455
    %631 = vmatprep.subr.mxu0 %v450
    %632 = vmatpush1.msra.mxu0 %v449
    %633 = vmatprep.subr.mxu0 %v444
    %634 = vmatpush1.msra.mxu0 %v443
    %635 = vmatprep.subr.mxu0 %v438
    %636 = vmatpush1.msra.mxu0 %v437
    %637 = vmatprep.subr.mxu0 %v432
    %638 = vmatpush1.msra.mxu0 %v431
    %639 = vmatprep.subr.mxu0 %v426
    %640 = vmatpush1.msra.mxu0 %v425
    %641 = vmatprep.subr.mxu0 %v420
    %642 = vmatpush1.msra.mxu0 %v419
    %643 = vmatprep.subr.mxu0 %v414
    %644 = vmatpush1.msra.mxu0 %v413
    %645 = vmatprep.subr.mxu0 %v408
    %646 = vmatpush1.msra.mxu0 %v407
    %647 = vmatprep.subr.mxu0 %v402
    %648 = vmatpush1.msra.mxu0 %v401
    %649 = vmatprep.subr.mxu0 %v396
    %650 = vmatpush1.msra.mxu0 %v395
    %651 = vmatprep.subr.mxu0 %v582
    %652 = vmatpush2.msra.mxu0 %v581
    %653 = vmatprep.subr.mxu0 %v576
    %654 = vmatpush2.msra.mxu0 %v575
    %655 = vmatprep.subr.mxu0 %v570
    %656 = vmatpush2.msra.mxu0 %v569
    %657 = vmatprep.subr.mxu0 %v564
    %658 = vmatpush2.msra.mxu0 %v563
    %659 = vmatprep.subr.mxu0 %v558
    %660 = vmatpush2.msra.mxu0 %v557
    %661 = vmatprep.subr.mxu0 %v552
    %662 = vmatpush2.msra.mxu0 %v551
    %663 = vmatprep.subr.mxu0 %v546
    %664 = vmatpush2.msra.mxu0 %v545
    %665 = vmatprep.subr.mxu0 %v540
    %666 = vmatpush2.msra.mxu0 %v539
    %667 = vmatprep.subr.mxu0 %v534
    %668 = vmatpush2.msra.mxu0 %v533
    %669 = vmatprep.subr.mxu0 %v528
    %670 = vmatpush2.msra.mxu0 %v527
    %671 = vmatprep.subr.mxu0 %v522
    %672 = vmatpush2.msra.mxu0 %v521
    %673 = vmatprep.subr.mxu0 %v516
    %674 = vmatpush2.msra.mxu0 %v515
    %675 = vmatprep.subr.mxu0 %v510
    %676 = vmatpush2.msra.mxu0 %v509
    %677 = vmatprep.subr.mxu0 %v504
    %678 = vmatpush2.msra.mxu0 %v503
    %679 = vmatprep.subr.mxu0 %v498
    %680 = vmatpush2.msra.mxu0 %v497
    %681 = vmatprep.subr.mxu0 %v492
    %682 = vmatpush2.msra.mxu0 %v491
    %683 = vmatprep.mubr.f32.mxu0 %v53
    %684 = vmatmul.mubr.f32.gmra.mxu0 %v52
    %v685 = vpop.f32.mrf.mxu0
    %v686 = vadd.f32 %v592, %v685
    %v687 = vpop.f32.mrf.mxu0
    %v688 = vadd.f32 %v596, %v687
    %689 = vdwg.mxu0
    %690 = vmatprep.subr.mxu0 %v488
    %691 = vmatpush1.msra.mxu0 %v487
    %692 = vmatprep.subr.mxu0 %v482
    %693 = vmatpush1.msra.mxu0 %v481
    %694 = vmatprep.subr.mxu0 %v476
    %695 = vmatpush1.msra.mxu0 %v475
    %696 = vmatprep.subr.mxu0 %v470
    %697 = vmatpush1.msra.mxu0 %v469
    %698 = vmatprep.subr.mxu0 %v464
    %699 = vmatpush1.msra.mxu0 %v463
    %700 = vmatprep.subr.mxu0 %v458
    %701 = vmatpush1.msra.mxu0 %v457
    %702 = vmatprep.subr.mxu0 %v452
    %703 = vmatpush1.msra.mxu0 %v451
    %704 = vmatprep.subr.mxu0 %v446
    %705 = vmatpush1.msra.mxu0 %v445
    %706 = vmatprep.subr.mxu0 %v440
    %707 = vmatpush1.msra.mxu0 %v439
    %708 = vmatprep.subr.mxu0 %v434
    %709 = vmatpush1.msra.mxu0 %v433
    %710 = vmatprep.subr.mxu0 %v428
    %711 = vmatpush1.msra.mxu0 %v427
    %712 = vmatprep.subr.mxu0 %v422
    %713 = vmatpush1.msra.mxu0 %v421
    %714 = vmatprep.subr.mxu0 %v416
    %715 = vmatpush1.msra.mxu0 %v415
    %716 = vmatprep.subr.mxu0 %v410
    %717 = vmatpush1.msra.mxu0 %v409
    %718 = vmatprep.subr.mxu0 %v404
    %719 = vmatpush1.msra.mxu0 %v403
    %720 = vmatprep.subr.mxu0 %v398
    %721 = vmatpush1.msra.mxu0 %v397
    %722 = vmatprep.subr.mxu0 %v584
    %723 = vmatpush2.msra.mxu0 %v583
    %724 = vmatprep.subr.mxu0 %v578
    %725 = vmatpush2.msra.mxu0 %v577
    %726 = vmatprep.subr.mxu0 %v572
    %727 = vmatpush2.msra.mxu0 %v571
    %728 = vmatprep.subr.mxu0 %v566
    %729 = vmatpush2.msra.mxu0 %v565
    %730 = vmatprep.subr.mxu0 %v560
    %731 = vmatpush2.msra.mxu0 %v559
    %732 = vmatprep.subr.mxu0 %v554
    %733 = vmatpush2.msra.mxu0 %v553
    %734 = vmatprep.subr.mxu0 %v548
    %735 = vmatpush2.msra.mxu0 %v547
    %736 = vmatprep.subr.mxu0 %v542
    %737 = vmatpush2.msra.mxu0 %v541
    %738 = vmatprep.subr.mxu0 %v536
    %739 = vmatpush2.msra.mxu0 %v535
    %740 = vmatprep.subr.mxu0 %v530
    %741 = vmatpush2.msra.mxu0 %v529
    %742 = vmatprep.subr.mxu0 %v524
    %743 = vmatpush2.msra.mxu0 %v523
    %744 = vmatprep.subr.mxu0 %v518
    %745 = vmatpush2.msra.mxu0 %v517
    %746 = vmatprep.subr.mxu0 %v512
    %747 = vmatpush2.msra.mxu0 %v511
    %748 = vmatprep.subr.mxu0 %v506
    %749 = vmatpush2.msra.mxu0 %v505
    %750 = vmatprep.subr.mxu0 %v500
    %751 = vmatpush2.msra.mxu0 %v499
    %752 = vmatprep.subr.mxu0 %v494
    %753 = vmatpush2.msra.mxu0 %v493
    %754 = vmatprep.mubr.f32.mxu0 %v53
    %755 = vmatmul.mubr.f32.gmra.mxu0 %v52
    %v756 = vpop.f32.mrf.mxu0
    %v757 = vadd.f32 %v600, %v756
    %v758 = vpop.f32.mrf.mxu0
    %v759 = vadd.f32 %v604, %v758
    %760 = vdwg.mxu0
    %761 = vmatprep.subr.mxu0 %v490
    %762 = vmatpush1.msra.mxu0 %v489
    %763 = vmatprep.subr.mxu0 %v484
    %764 = vmatpush1.msra.mxu0 %v483
    %765 = vmatprep.subr.mxu0 %v478
    %766 = vmatpush1.msra.mxu0 %v477
    %767 = vmatprep.subr.mxu0 %v472
    %768 = vmatpush1.msra.mxu0 %v471
    %769 = vmatprep.subr.mxu0 %v466
    %770 = vmatpush1.msra.mxu0 %v465
    %771 = vmatprep.subr.mxu0 %v460
    %772 = vmatpush1.msra.mxu0 %v459
    %773 = vmatprep.subr.mxu0 %v454
    %774 = vmatpush1.msra.mxu0 %v453
    %775 = vmatprep.subr.mxu0 %v448
    %776 = vmatpush1.msra.mxu0 %v447
    %777 = vmatprep.subr.mxu0 %v442
    %778 = vmatpush1.msra.mxu0 %v441
    %779 = vmatprep.subr.mxu0 %v436
    %780 = vmatpush1.msra.mxu0 %v435
    %781 = vmatprep.subr.mxu0 %v430
    %782 = vmatpush1.msra.mxu0 %v429
    %783 = vmatprep.subr.mxu0 %v424
    %784 = vmatpush1.msra.mxu0 %v423
    %785 = vmatprep.subr.mxu0 %v418
    %786 = vmatpush1.msra.mxu0 %v417
    %787 = vmatprep.subr.mxu0 %v412
    %788 = vmatpush1.msra.mxu0 %v411
    %789 = vmatprep.subr.mxu0 %v406
    %790 = vmatpush1.msra.mxu0 %v405
    %791 = vmatprep.subr.mxu0 %v400
    %792 = vmatpush1.msra.mxu0 %v399
    %793 = vmatprep.subr.mxu0 %v586
    %794 = vmatpush2.msra.mxu0 %v585
    %795 = vmatprep.subr.mxu0 %v580
    %796 = vmatpush2.msra.mxu0 %v579
    %797 = vmatprep.subr.mxu0 %v574
    %798 = vmatpush2.msra.mxu0 %v573
    %799 = vmatprep.subr.mxu0 %v568
    %800 = vmatpush2.msra.mxu0 %v567
    %801 = vmatprep.subr.mxu0 %v562
    %802 = vmatpush2.msra.mxu0 %v561
    %803 = vmatprep.subr.mxu0 %v556
    %804 = vmatpush2.msra.mxu0 %v555
    %805 = vmatprep.subr.mxu0 %v550
    %806 = vmatpush2.msra.mxu0 %v549
    %807 = vmatprep.subr.mxu0 %v544
    %808 = vmatpush2.msra.mxu0 %v543
    %809 = vmatprep.subr.mxu0 %v538
    %810 = vmatpush2.msra.mxu0 %v537
    %811 = vmatprep.subr.mxu0 %v532
    %812 = vmatpush2.msra.mxu0 %v531
    %813 = vmatprep.subr.mxu0 %v526
    %814 = vmatpush2.msra.mxu0 %v525
    %815 = vmatprep.subr.mxu0 %v520
    %816 = vmatpush2.msra.mxu0 %v519
    %817 = vmatprep.subr.mxu0 %v514
    %818 = vmatpush2.msra.mxu0 %v513
    %819 = vmatprep.subr.mxu0 %v508
    %820 = vmatpush2.msra.mxu0 %v507
    %821 = vmatprep.subr.mxu0 %v502
    %822 = vmatpush2.msra.mxu0 %v501
    %823 = vmatprep.subr.mxu0 %v496
    %824 = vmatpush2.msra.mxu0 %v495
    %825 = vmatprep.mubr.f32.mxu0 %v53
    %826 = vmatmul.mubr.f32.gmra.mxu0 %v52
    %v827 = vpop.f32.mrf.mxu0
    %v828 = vadd.f32 %v608, %v827
    %v829 = vpop.f32.mrf.mxu0
    %v830 = vadd.f32 %v612, %v829
    %831 = vdwg.mxu0
    %v832 = vadd.f32 %v249, %v686
    %v833 = vadd.f32 %v251, %v688
    %v834 = vxor.u32 %v832, 2147483648
    %v835 = vxor.u32 %v833, 2147483648
    %v836 = vmul.f32 %v834, 1.442695
    %v837 = vpow.pop %v836
    %v838 = vmul.f32 %v835, 1.442695
    %v839 = vpow.pop %v838
    %v840 = vadd.f32 %v837, 1.0
    %v841 = vadd.f32 %v839, 1.0
    %v842 = vrcp.pop %v840
    %v843 = vmul.f32 1.0, %v842
    %v844 = vrcp.pop %v841
    %v845 = vmul.f32 1.0, %v844
    %v846 = vadd.f32 %v320, %v757
    %v847 = vadd.f32 %v322, %v759
    %v848 = vxor.u32 %v846, 2147483648
    %v849 = vxor.u32 %v847, 2147483648
    %v850 = vmul.f32 %v848, 1.442695
    %v851 = vpow.pop %v850
    %v852 = vmul.f32 %v849, 1.442695
    %v853 = vpow.pop %v852
    %v854 = vadd.f32 %v851, 1.0
    %v855 = vadd.f32 %v853, 1.0
    %v856 = vrcp.pop %v854
    %v857 = vmul.f32 1.0, %v856
    %v858 = vrcp.pop %v855
    %v859 = vmul.f32 1.0, %v858
    %v860 = vmul.f32 %v843, %v828
    %v861 = vmul.f32 %v845, %v830
    %v862 = vadd.f32 %v391, %v860
    %v863 = vadd.f32 %v393, %v861
    %v864 = vtanh.pop %v862
    %v865 = vtanh.pop %v863
    %v866 = vsub.f32 1.0, %v857
    %v867 = vsub.f32 1.0, %v859
    %v868 = vmul.f32 %v866, %v864
    %v869 = vmul.f32 %v867, %v865
    %v870 = vmul.f32 %v857, %v52
    %v871 = vmul.f32 %v859, %v53
    %v872 = vadd.f32 %v868, %v870
    %v873 = vadd.f32 %v869, %v871
    %874 = vst [vmem:[%s6] sm:$0xff] %v872
    %875 = vst [vmem:[%s6 + $0x8] sm:$0xff] %v873
    // Predicated region
    $region34: #{rnn_decoder_forward.2} parent=1 // pred_check
      _
    $region35: #{rnn_decoder_forward.2} parent=1 // pred_check_branch
      %877 = sbr.rel (0) target = $region37
    $region36: #{rnn_decoder_forward.2} parent=1 // pred_region
      _
    $region37: #{rnn_decoder_forward.2} parent=1 // pred_fallthru
      _
    // Predicated region
    $region38: #{rnn_decoder_forward.2} parent=1 // pred_check
      _
    $region39: #{rnn_decoder_forward.2} parent=1 // pred_check_branch
      %879 = sbr.rel (0) target = $region41
    $region40: #{rnn_decoder_forward.2} parent=1 // pred_region
      _
    $region41: #{rnn_decoder_forward.2} parent=1 // pred_fallthru
      _
    %880 = vsyncpa [#allocation3], 1
    %881 = vsyncpa [#allocation5], 1

</llo_original>
